<compile_context>
chip_gen: v7x
topology: tpu7x:2x2x1
jax: 0.10.0
libtpu: 0.0.40
codegen_flags: <defaults>
</compile_context>

<pallas_src>
import numpy as np
import jax
import jax.numpy as jnp
from jax.experimental import pallas as pl
from jax.experimental.pallas import tpu as pltpu

# ---- fixed synthetic irreps configuration -------------------------------------------
MUL = 4
FEAT_DIM = MUL * 1 + MUL * 3          # 16  ("4x0e + 4x1o")
ATTR_DIM = 1 + 3                      # 4   ("1x0e + 1x1o")
N_INS = 5
W_DIM = N_INS * MUL                   # 20  (uvu weights, mul_v = 1)
OUT_DIM = MUL * (1 + 3 + 3 + 1 + 3)   # 44
OUT_PAD = 128                         # lane-dense output width (pad 44 -> 128)

_SQRT3 = 3.0 ** 0.5
_SQRT6 = 6.0 ** 0.5
# path_weight * wigner_3j constant per instruction
# (e3nn defaults: irrep_normalization='component', path_normalization='element')
C0 = 1.0              # 0e x 0e -> 0e
C1 = 1.0              # 0e x 1o -> 1o
C2 = 1.0              # 1o x 0e -> 1o
C3 = 1.0 / _SQRT3     # 1o x 1o -> 0e   (dot product)
C4 = _SQRT3 / _SQRT6  # 1o x 1o -> 1o   (cross product)


def _build_constants():
    """Clebsch-Gordan matrix CG[(j,i), out_lane] and weight-expansion map WMAP[w_idx, out_lane].

    feat_pre[e, o] = sum_{j,i} attr[e, j] * x_src[e, i] * CG[j*16 + i, o]
    w_exp[e, o]    = sum_k   edge_weight[e, k] * WMAP[k, o]     (0/1 map, one w per lane)
    feat[e, o]     = feat_pre[e, o] * w_exp[e, o]
    Output lanes 44..127 are zero padding.
    """
    cg = np.zeros((ATTR_DIM, FEAT_DIM, OUT_PAD), np.float32)
    wmap = np.zeros((W_DIM, OUT_PAD), np.float32)
    for u in range(MUL):
        # instruction 0: 4x0e (x) 1x0e -> 4x0e   (out lane u)
        cg[0, u, u] = C0
        wmap[0 * MUL + u, u] = 1.0
        # instruction 1: 4x0e (x) 1x1o -> 4x1o   (out lanes 4 + 3u + m)
        for m in range(3):
            cg[1 + m, u, 4 + 3 * u + m] = C1
            wmap[1 * MUL + u, 4 + 3 * u + m] = 1.0
        # instruction 2: 4x1o (x) 1x0e -> 4x1o   (out lanes 16 + 3u + m)
        for m in range(3):
            cg[0, MUL + 3 * u + m, 16 + 3 * u + m] = C2
            wmap[2 * MUL + u, 16 + 3 * u + m] = 1.0
        # instruction 3: 4x1o (x) 1x1o -> 4x0e   (dot product; out lane 28 + u)
        for m in range(3):
            cg[1 + m, MUL + 3 * u + m, 28 + u] = C3
        wmap[3 * MUL + u, 28 + u] = 1.0
        # instruction 4: 4x1o (x) 1x1o -> 4x1o   (cross product; out lanes 32 + 3u + m)
        base = 32 + 3 * u
        # cx = xv1*a1z - xv2*a1y
        cg[3, MUL + 3 * u + 1, base + 0] = C4
        cg[2, MUL + 3 * u + 2, base + 0] = -C4
        # cy = xv2*a1x - xv0*a1z
        cg[1, MUL + 3 * u + 2, base + 1] = C4
        cg[3, MUL + 3 * u + 0, base + 1] = -C4
        # cz = xv0*a1y - xv1*a1x
        cg[2, MUL + 3 * u + 0, base + 2] = C4
        cg[1, MUL + 3 * u + 1, base + 2] = -C4
        for m in range(3):
            wmap[4 * MUL + u, base + m] = 1.0
    return cg.reshape(ATTR_DIM * FEAT_DIM, OUT_PAD), wmap


def _tp_scatter_kernel(xsrc_ref, attr_ref, w_ref, dst_ref, cg_ref, wmap_ref, out_ref):
    # Zero this core's resident accumulator slab at the start of its edge range.
    @pl.when(pl.program_id(1) == 0)
    def _():
        out_ref[...] = jnp.zeros_like(out_ref)

    t_e = xsrc_ref.shape[0]
    n_nodes = out_ref.shape[0]

    x_src = xsrc_ref[...]                                   # (tE, 16) f32, already gathered
    attr = attr_ref[...]                                    # (tE, 4)  f32

    # ---- per-edge tensor product as MXU work: feat_pre = sum_j (a_j * x_src) @ CG_j ----
    feat = None
    for j in range(ATTR_DIM):
        ax = attr[:, j:j + 1] * x_src                       # (tE, 16)
        term = jnp.dot(ax, cg_ref[FEAT_DIM * j:FEAT_DIM * (j + 1), :],
                       preferred_element_type=jnp.float32)  # (tE, 128)
        feat = term if feat is None else feat + term

    # expand per-edge weights (tE, 20) -> (tE, 128) via constant 0/1 map (MXU), then scale.
    w_exp = jnp.dot(w_ref[...], wmap_ref[...],
                    preferred_element_type=jnp.float32)     # (tE, 128)
    feat = feat * w_exp                                     # (tE, 128), lanes 44.. are 0

    # ---- scatter-add over edge_dst: one-hot built already transposed (N, tE) -----------
    # (kept in f32: 0/1 one-hot is exact and feat stays f32 for tight tolerances; casting
    #  both to bf16 is a further option if looser accuracy is acceptable.)
    dst = dst_ref[...]                                      # (1, tE) int32, lane-dense
    node_iota = jax.lax.broadcasted_iota(jnp.int32, (n_nodes, t_e), 0)
    scatter_oh = (node_iota == dst).astype(jnp.float32)     # (N, tE)
    out_ref[...] += jnp.dot(scatter_oh, feat,
                            preferred_element_type=jnp.float32)  # (N, 128)


def tensor_product_scatter(x, edge_attr, edge_weight, edge_dst, edge_src,
                           *, edge_tile=256, num_cores=2):
    n_nodes, feat_dim = x.shape
    n_edges = edge_attr.shape[0]
    assert feat_dim == FEAT_DIM and edge_attr.shape[1] == ATTR_DIM
    assert edge_weight.shape == (n_edges, W_DIM)
    assert edge_tile % 128 == 0 and num_cores >= 1

    # ---- pad edges to a multiple of (num_cores * edge_tile) with zero-weight edges ------
    chunk = num_cores * edge_tile
    e_pad = ((n_edges + chunk - 1) // chunk) * chunk
    pad = e_pad - n_edges

    edge_src = edge_src.astype(jnp.int32)
    edge_dst = edge_dst.astype(jnp.int32)
    edge_attr = edge_attr.astype(jnp.float32)
    edge_weight = edge_weight.astype(jnp.float32)
    if pad:
        edge_attr = jnp.pad(edge_attr, ((0, pad), (0, 0)))
        edge_weight = jnp.pad(edge_weight, ((0, pad), (0, 0)))  # zero weight -> contributes 0
        edge_src = jnp.pad(edge_src, (0, pad))                  # gathers node 0 (harmless)
        edge_dst = jnp.pad(edge_dst, (0, pad))                  # scatters zeros into node 0

    # ---- gather x[edge_src] outside the kernel (exactly what the module does) -----------
    # This removes the O(E*N) in-kernel one-hot gather; the kernel fuses TP + scatter.
    x_src = jnp.take(x.astype(jnp.float32), edge_src, axis=0)  # (E_pad, 16)
    dst_row = edge_dst.reshape(1, e_pad)                        # lane-dense index layout

    cg_np, wmap_np = _build_constants()
    cg = jnp.asarray(cg_np)
    wmap = jnp.asarray(wmap_np)

    steps = e_pad // chunk                                      # grid steps per core
    grid = (num_cores, steps)

    out = pl.pallas_call(
        _tp_scatter_kernel,
        out_shape=jax.ShapeDtypeStruct((num_cores, n_nodes, OUT_PAD), jnp.float32),
        grid=grid,
        in_specs=[
            pl.BlockSpec((edge_tile, FEAT_DIM), lambda c, i: (c * steps + i, 0)),  # x_src tile
            pl.BlockSpec((edge_tile, ATTR_DIM), lambda c, i: (c * steps + i, 0)),  # edge_attr
            pl.BlockSpec((edge_tile, W_DIM),    lambda c, i: (c * steps + i, 0)),  # edge_weight
            pl.BlockSpec((1, edge_tile),        lambda c, i: (0, c * steps + i)),  # edge_dst row
            pl.BlockSpec((ATTR_DIM * FEAT_DIM, OUT_PAD), lambda c, i: (0, 0)),     # CG (resident)
            pl.BlockSpec((W_DIM, OUT_PAD),      lambda c, i: (0, 0)),              # WMAP (resident)
        ],
        # per-core partial output slab, resident across the "arbitrary" edge axis
        out_specs=pl.BlockSpec((None, n_nodes, OUT_PAD), lambda c, i: (c, 0, 0)),
        compiler_params=pltpu.CompilerParams(
            dimension_semantics=("parallel", "arbitrary"),
            vmem_limit_bytes=48 * 1024 * 1024),
    )(x_src, edge_attr, edge_weight, dst_row, cg, wmap)

    # reduce per-core partials and drop lane padding
    return jnp.sum(out, axis=0)[:, :OUT_DIM]


def _reference(x, edge_attr, edge_weight, edge_dst, edge_src):
    """Pure-JAX reference of the same TP + scatter (for correctness check)."""
    x_src = x[edge_src]
    x_sc = x_src[:, :MUL]
    x_vec = x_src[:, MUL:].reshape(-1, MUL, 3)
    a0 = edge_attr[:, 0:1]
    a1 = edge_attr[:, 1:4]
    w = edge_weight.reshape(-1, N_INS, MUL)
    out0 = C0 * w[:, 0] * x_sc * a0
    out1 = C1 * (w[:, 1] * x_sc)[:, :, None] * a1[:, None, :]
    out2 = C2 * (w[:, 2] * a0)[:, :, None] * x_vec
    out3 = C3 * w[:, 3] * jnp.sum(x_vec * a1[:, None, :], axis=-1)
    out4 = C4 * w[:, 4][:, :, None] * jnp.cross(
        x_vec, jnp.broadcast_to(a1[:, None, :], x_vec.shape), axis=-1)
    feat = jnp.concatenate(
        [out0, out1.reshape(-1, MUL * 3), out2.reshape(-1, MUL * 3),
         out3, out4.reshape(-1, MUL * 3)], axis=1)
    return jnp.zeros((x.shape[0], OUT_DIM), jnp.float32).at[edge_dst].add(feat)


if __name__ == "__main__":
    n_nodes, n_edges = 16, 64
    key = jax.random.PRNGKey(0)
    k1, k2, k3, k4, k5 = jax.random.split(key, 5)
    x = jax.random.normal(k1, (n_nodes, FEAT_DIM), jnp.float32)
    edge_attr = jax.random.normal(k2, (n_edges, ATTR_DIM), jnp.float32)
    edge_weight = jax.random.normal(k3, (n_edges, W_DIM), jnp.float32)
    edge_src = jax.random.randint(k4, (n_edges,), 0, n_nodes, jnp.int32)
    edge_dst = jax.random.randint(k5, (n_edges,), 0, n_nodes, jnp.int32)

    out = tensor_product_scatter(x, edge_attr, edge_weight, edge_dst, edge_src)
    out = jax.block_until_ready(out)

    ref = _reference(x, edge_attr, edge_weight, edge_dst, edge_src)
    assert out.shape == (n_nodes, OUT_DIM)
    err = float(jnp.max(jnp.abs(out - ref)))
    assert jnp.allclose(out, ref, atol=1e-4, rtol=1e-4), f"max abs err {err}"

    # TODO(synk): enable_OpenEquivariance / model_modifier is training-infra graph surgery,
    # not compute; nothing to translate.
    print("KERNEL_OK")
</pallas_src>

<mosaic_0001>
module attributes {stable_mosaic.version = 11 : i64} {
  func.func @_tp_scatter_kernel(%arg0: i32, %arg1: i32, %arg2: memref<256x16xf32, #tpu.memory_space<vmem>>, %arg3: memref<256x4xf32, #tpu.memory_space<vmem>>, %arg4: memref<256x20xf32, #tpu.memory_space<vmem>>, %arg5: memref<1x256xi32, #tpu.memory_space<vmem>>, %arg6: memref<64x128xf32, #tpu.memory_space<vmem>>, %arg7: memref<20x128xf32, #tpu.memory_space<vmem>>, %arg8: memref<1x16x128xf32, #tpu.memory_space<vmem>>) attributes {dimension_semantics = [#tpu.dimension_semantics<parallel>, #tpu.dimension_semantics<arbitrary>], iteration_bounds = array<i64: 2, 1>, scalar_prefetch = 0 : i64, scratch_operands = 0 : i64, tpu.core_type = #tpu.core_type<tc>, window_params = [{transform_indices = @transform_0, window_bounds = array<i64: 256, 16>}, {transform_indices = @transform_1, window_bounds = array<i64: 256, 4>}, {transform_indices = @transform_2, window_bounds = array<i64: 256, 20>}, {transform_indices = @transform_3, window_bounds = array<i64: 1, 256>}, {pipeline_mode = #tpu.pipeline_mode<synchronous>, transform_indices = @transform_4, window_bounds = array<i64: 64, 128>}, {pipeline_mode = #tpu.pipeline_mode<synchronous>, transform_indices = @transform_5, window_bounds = array<i64: 20, 128>}, {transform_indices = @transform_6, window_bounds = array<i64: 1, 16, 128>}]} {
    %c0_i32 = arith.constant 0 : i32
    %0 = arith.cmpi eq, %arg1, %c0_i32 : i32
    %1 = arith.extui %0 : i1 to i32
    %c0_i32_0 = arith.constant 0 : i32
    %2 = arith.cmpi ne, %1, %c0_i32_0 : i32
    scf.if %2 {
      %cst_26 = arith.constant 0.000000e+00 : f32
      %45 = vector.broadcast %cst_26 : f32 to vector<16x128xf32>
      %c0_27 = arith.constant 0 : index
      %c0_28 = arith.constant 0 : index
      %c0_29 = arith.constant 0 : index
      %46 = vector.load %arg8[%c0_27, %c0_28, %c0_29] : memref<1x16x128xf32, #tpu.memory_space<vmem>>, vector<1x16x128xf32>
      %47 = vector.shape_cast %46 : vector<1x16x128xf32> to vector<16x128xf32>
      %48 = vector.shape_cast %45 : vector<16x128xf32> to vector<1x16x128xf32>
      tpu.vector_store %arg8[%c0_27, %c0_28, %c0_29], %48 {strides = array<i32>} : memref<1x16x128xf32, #tpu.memory_space<vmem>>, vector<1x16x128xf32>,
    } else {
    }
    %c0 = arith.constant 0 : index
    %c0_1 = arith.constant 0 : index
    %3 = vector.load %arg2[%c0, %c0_1] : memref<256x16xf32, #tpu.memory_space<vmem>>, vector<256x16xf32>
    %c0_2 = arith.constant 0 : index
    %c0_3 = arith.constant 0 : index
    %4 = vector.load %arg3[%c0_2, %c0_3] : memref<256x4xf32, #tpu.memory_space<vmem>>, vector<256x4xf32>
    %5 = vector.extract_strided_slice %4 {offsets = [0, 0], sizes = [256, 1], strides = [1, 1]} : vector<256x4xf32> to vector<256x1xf32>
    %6 = vector.broadcast %5 : vector<256x1xf32> to vector<256x16xf32>
    %7 = arith.mulf %6, %3 : vector<256x16xf32>
    %c0_4 = arith.constant 0 : index
    %c0_5 = arith.constant 0 : index
    %8 = vector.load %arg6[%c0_4, %c0_5] : memref<64x128xf32, #tpu.memory_space<vmem>>, vector<16x128xf32>
    %cst = arith.constant dense<0.000000e+00> : vector<256x128xf32>
    %9 = tpu.matmul %7, %8, %cst {dimension_numbers = #tpu.dot_dimension_numbers<[1], [0], [0], [1], [0, 0, 1, 1], [], []>} : vector<256x16xf32>, vector<16x128xf32>, vector<256x128xf32> -> vector<256x128xf32>
    %10 = vector.extract_strided_slice %4 {offsets = [0, 1], sizes = [256, 1], strides = [1, 1]} : vector<256x4xf32> to vector<256x1xf32>
    %11 = vector.broadcast %10 : vector<256x1xf32> to vector<256x16xf32>
    %12 = arith.mulf %11, %3 : vector<256x16xf32>
    %c16 = arith.constant 16 : index
    %c0_6 = arith.constant 0 : index
    %13 = vector.load %arg6[%c16, %c0_6] : memref<64x128xf32, #tpu.memory_space<vmem>>, vector<16x128xf32>
    %cst_7 = arith.constant dense<0.000000e+00> : vector<256x128xf32>
    %14 = tpu.matmul %12, %13, %cst_7 {dimension_numbers = #tpu.dot_dimension_numbers<[1], [0], [0], [1], [0, 0, 1, 1], [], []>} : vector<256x16xf32>, vector<16x128xf32>, vector<256x128xf32> -> vector<256x128xf32>
    %15 = arith.addf %9, %14 : vector<256x128xf32>
    %16 = vector.extract_strided_slice %4 {offsets = [0, 2], sizes = [256, 1], strides = [1, 1]} : vector<256x4xf32> to vector<256x1xf32>
    %17 = vector.broadcast %16 : vector<256x1xf32> to vector<256x16xf32>
    %18 = arith.mulf %17, %3 : vector<256x16xf32>
    %c32 = arith.constant 32 : index
    %c0_8 = arith.constant 0 : index
    %19 = vector.load %arg6[%c32, %c0_8] : memref<64x128xf32, #tpu.memory_space<vmem>>, vector<16x128xf32>
    %cst_9 = arith.constant dense<0.000000e+00> : vector<256x128xf32>
    %20 = tpu.matmul %18, %19, %cst_9 {dimension_numbers = #tpu.dot_dimension_numbers<[1], [0], [0], [1], [0, 0, 1, 1], [], []>} : vector<256x16xf32>, vector<16x128xf32>, vector<256x128xf32> -> vector<256x128xf32>
    %21 = arith.addf %15, %20 : vector<256x128xf32>
    %22 = vector.extract_strided_slice %4 {offsets = [0, 3], sizes = [256, 1], strides = [1, 1]} : vector<256x4xf32> to vector<256x1xf32>
    %23 = vector.broadcast %22 : vector<256x1xf32> to vector<256x16xf32>
    %24 = arith.mulf %23, %3 : vector<256x16xf32>
    %c48 = arith.constant 48 : index
    %c0_10 = arith.constant 0 : index
    %25 = vector.load %arg6[%c48, %c0_10] : memref<64x128xf32, #tpu.memory_space<vmem>>, vector<16x128xf32>
    %cst_11 = arith.constant dense<0.000000e+00> : vector<256x128xf32>
    %26 = tpu.matmul %24, %25, %cst_11 {dimension_numbers = #tpu.dot_dimension_numbers<[1], [0], [0], [1], [0, 0, 1, 1], [], []>} : vector<256x16xf32>, vector<16x128xf32>, vector<256x128xf32> -> vector<256x128xf32>
    %27 = arith.addf %21, %26 : vector<256x128xf32>
    %c0_12 = arith.constant 0 : index
    %c0_13 = arith.constant 0 : index
    %28 = vector.load %arg4[%c0_12, %c0_13] : memref<256x20xf32, #tpu.memory_space<vmem>>, vector<256x20xf32>
    %c0_14 = arith.constant 0 : index
    %c0_15 = arith.constant 0 : index
    %29 = vector.load %arg7[%c0_14, %c0_15] : memref<20x128xf32, #tpu.memory_space<vmem>>, vector<20x128xf32>
    %cst_16 = arith.constant dense<0.000000e+00> : vector<256x128xf32>
    %30 = tpu.matmul %28, %29, %cst_16 {dimension_numbers = #tpu.dot_dimension_numbers<[1], [0], [0], [1], [0, 0, 1, 1], [], []>} : vector<256x20xf32>, vector<20x128xf32>, vector<256x128xf32> -> vector<256x128xf32>
    %31 = arith.mulf %27, %30 : vector<256x128xf32>
    %c0_17 = arith.constant 0 : index
    %c0_18 = arith.constant 0 : index
    %32 = vector.load %arg5[%c0_17, %c0_18] : memref<1x256xi32, #tpu.memory_space<vmem>>, vector<1x256xi32>
    %33 = tpu.iota {dimensions = array<i32: 0>} : vector<16x256xi32>
    %34 = vector.broadcast %32 : vector<1x256xi32> to vector<16x256xi32>
    %35 = arith.cmpi eq, %33, %34 : vector<16x256xi32>
    %36 = arith.extui %35 : vector<16x256xi1> to vector<16x256xi32>
    %37 = arith.sitofp %36 : vector<16x256xi32> to vector<16x256xf32>
    %c0_19 = arith.constant 0 : index
    %c0_20 = arith.constant 0 : index
    %c0_21 = arith.constant 0 : index
    %38 = vector.load %arg8[%c0_19, %c0_20, %c0_21] : memref<1x16x128xf32, #tpu.memory_space<vmem>>, vector<1x16x128xf32>
    %39 = vector.shape_cast %38 : vector<1x16x128xf32> to vector<16x128xf32>
    %cst_22 = arith.constant dense<0.000000e+00> : vector<16x128xf32>
    %40 = tpu.matmul %37, %31, %cst_22 {dimension_numbers = #tpu.dot_dimension_numbers<[1], [0], [0], [1], [0, 0, 1, 1], [], []>} : vector<16x256xf32>, vector<256x128xf32>, vector<16x128xf32> -> vector<16x128xf32>
    %41 = arith.addf %39, %40 : vector<16x128xf32>
    %c0_23 = arith.constant 0 : index
    %c0_24 = arith.constant 0 : index
    %c0_25 = arith.constant 0 : index
    %42 = vector.load %arg8[%c0_23, %c0_24, %c0_25] : memref<1x16x128xf32, #tpu.memory_space<vmem>>, vector<1x16x128xf32>
    %43 = vector.shape_cast %42 : vector<1x16x128xf32> to vector<16x128xf32>
    %44 = vector.shape_cast %41 : vector<16x128xf32> to vector<1x16x128xf32>
    tpu.vector_store %arg8[%c0_23, %c0_24, %c0_25], %44 {strides = array<i32>} : memref<1x16x128xf32, #tpu.memory_space<vmem>>, vector<1x16x128xf32>,
    return
  }
  func.func @transform_0(%arg0: i32, %arg1: i32) -> (i32, i32) {
    %c1_i32 = arith.constant 1 : i32
    %0 = arith.muli %arg0, %c1_i32 : i32
    %1 = arith.addi %0, %arg1 : i32
    %c0_i32 = arith.constant 0 : i32
    %c0_i32_0 = arith.constant 0 : i32
    return %1, %c0_i32 : i32, i32
  }
  func.func @transform_1(%arg0: i32, %arg1: i32) -> (i32, i32) {
    %c1_i32 = arith.constant 1 : i32
    %0 = arith.muli %arg0, %c1_i32 : i32
    %1 = arith.addi %0, %arg1 : i32
    %c0_i32 = arith.constant 0 : i32
    %c0_i32_0 = arith.constant 0 : i32
    return %1, %c0_i32 : i32, i32
  }
  func.func @transform_2(%arg0: i32, %arg1: i32) -> (i32, i32) {
    %c1_i32 = arith.constant 1 : i32
    %0 = arith.muli %arg0, %c1_i32 : i32
    %1 = arith.addi %0, %arg1 : i32
    %c0_i32 = arith.constant 0 : i32
    %c0_i32_0 = arith.constant 0 : i32
    return %1, %c0_i32 : i32, i32
  }
  func.func @transform_3(%arg0: i32, %arg1: i32) -> (i32, i32) {
    %c1_i32 = arith.constant 1 : i32
    %0 = arith.muli %arg0, %c1_i32 : i32
    %1 = arith.addi %0, %arg1 : i32
    %c0_i32 = arith.constant 0 : i32
    %c0_i32_0 = arith.constant 0 : i32
    return %c0_i32, %1 : i32, i32
  }
  func.func @transform_4(%arg0: i32, %arg1: i32) -> (i32, i32) {
    %c0_i32 = arith.constant 0 : i32
    %c0_i32_0 = arith.constant 0 : i32
    %c0_i32_1 = arith.constant 0 : i32
    return %c0_i32, %c0_i32_0 : i32, i32
  }
  func.func @transform_5(%arg0: i32, %arg1: i32) -> (i32, i32) {
    %c0_i32 = arith.constant 0 : i32
    %c0_i32_0 = arith.constant 0 : i32
    %c0_i32_1 = arith.constant 0 : i32
    return %c0_i32, %c0_i32_0 : i32, i32
  }
  func.func @transform_6(%arg0: i32, %arg1: i32) -> (i32, i32, i32) {
    %c0_i32 = arith.constant 0 : i32
    %c0_i32_0 = arith.constant 0 : i32
    %c0_i32_1 = arith.constant 0 : i32
    return %arg0, %c0_i32, %c0_i32_0 : i32, i32, i32
  }
}

</mosaic_0001>

<llo_original>
// kernel: tpu_custom_call.1
$region0: #{tpu_custom_call.1}
  #allocation0 [shape = 'u32[]', space=smem, size = 0x4, offset = 0x4, fixed_abs, tag = 'smem constant byte address 0x4 - core index']
  #allocation1 [shape = 'u32[144,128]{1,0:T(1,128)}', space=vmem, size = 0x12000, scoped, tag = 'internal scratch']
  %s0 = inlined_call_operand.vmem [shape: f32[512,16], index: 0, kind: input, shape index: {}]
  %s1 = inlined_call_operand.vmem [shape: f32[512,4], index: 1, kind: input, shape index: {}]
  %s2 = inlined_call_operand.vmem [shape: f32[512,20], index: 2, kind: input, shape index: {}]
  %s3 = inlined_call_operand.vmem [shape: s32[1,512], index: 3, kind: input, shape index: {}]
  %s4 = inlined_call_operand.vmem [shape: f32[64,128], index: 4, kind: input, shape index: {}]
  %s5 = inlined_call_operand.vmem [shape: f32[20,128], index: 5, kind: input, shape index: {}]
  %s6 = inlined_call_operand.hbm [shape: f32[2,16,128], index: 6, kind: output, shape index: {}]
  %s7 = sld [smem:[#allocation0]]
  $region61: #{tpu_custom_call.1} parent=0
    _
  %s9 = ssub.s32 1, %s7
  %s10 = scalar_select 0, %s9, %s7
  $region1: #{tpu_custom_call.1} parent=0
    #allocation2 [shape = 'u8[16384]{0}', space=vmem, size = 0x4000, scoped, tag = 'output window, operand 0']
    #allocation3 [shape = 's32[2]{0}', space=sflag, size = 0x8, scoped, tag = 'scoped memory for tpu_custom_call.1']
    %11 = vsyncpa [#allocation3], 0
    %s12 = scalar_lea.sflag [#allocation3], 1
    %13 = vsyncpa %s12, 0
    loop: start=0, step=1, limit=4
    $region2: #{tpu_custom_call.1} parent=1 // loop_pre_header
      _
    $region3: #{tpu_custom_call.1} parent=1 // loop_header
      %s15 = sphi 0, %s19
      %p16 = scmp.ge.s32.totalorder %s15, 4
      %s22 = sphi 0, %s34
      %s23 = sphi 0, %s30
      %s24 = sphi 0, %s22
      %s25 = sphi 0, %s23
      %s26 = sphi 0, %s24
      %s27 = sphi 0, %s25
      %s39 = sphi 0, %s41
      %s42 = sphi 0, %s39
      %s43 = sphi 0, %s42
      %s59 = sphi 0, %s43
      %s67 = sphi 0, %s69
      %s70 = sphi 0, %s67
      %s71 = sphi 0, %s70
      %s87 = sphi 0, %s71
      %s95 = sphi 0, %s97
      %s98 = sphi 0, %s95
      %s99 = sphi 0, %s98
      %s115 = sphi 0, %s99
      %s123 = sphi 0, %s125
      %s126 = sphi 0, %s123
      %s127 = sphi 0, %s126
      %s143 = sphi 0, %s127
      %s147 = sphi 0, %s147
      %s149 = sphi 0, %s147
      %s150 = sphi 0, %s149
      %s164 = sphi 0, %s150
      %s168 = sphi 0, %s168
      %s170 = sphi 0, %s168
      %s171 = sphi 0, %s170
      %s185 = sphi 0, %s171
      %s191 = sphi 0, %s193
      %s194 = sphi 0, %s191
      %s195 = sphi 0, %s194
      %s211 = sphi 0, %s195
    $region4: #{tpu_custom_call.1} parent=1 // loop_header_branch
      %18 = sbr.rel (%p16) target = $region8
    $region5: #{tpu_custom_call.1} parent=1 // loop_body
      %s20 = ssub.s32 %s15, 1
      %s21 = ssub.s32 %s15, 2
      %s28 = sadd.s32 1, %s23
      %p29 = scmp.ge.s32.totalorder %s28, 1
      %s30 = scalar_select %p29, 0, %s28
      %s31 = sadd.s32 1, %s22
      %s32 = scalar_select %p29, %s31, %s22
      %p33 = scmp.ge.s32.totalorder %s32, 2
      %s34 = scalar_select %p33, 0, %s32
      %s35 = sadd.s32 %s22, %s23
      %s36 = sadd.s32 %s34, %s30
      %s37 = ssub.s32 %s35, %s36
      %p38 = scmp.eq.s32.totalorder %s37, 0
      %s40 = sadd.s32 %s39, 1
      %s41 = scalar_select %p38, %s39, %s40
      %p44 = pneg %p38
      %p45 = scmp.eq.s32.totalorder %s15, 1
      %p46 = por %p44, %p45
      %p47 = scmp.ne.s32.totalorder %s39, %s42
      %p48 = scmp.eq.s32.totalorder %s15, 0
      %p49 = por %p47, %p48
      %p50 = scmp.ne.s32.totalorder %s39, %s42
      %p51 = scmp.eq.s32.totalorder %s20, 1
      %p52 = por %p50, %p51
      %p53 = scmp.ne.s32.totalorder %s42, %s43
      %p54 = scmp.eq.s32.totalorder %s20, 0
      %p55 = por %p53, %p54
      %p56 = scmp.ne.s32.totalorder %s42, %s43
      %p57 = scmp.eq.s32.totalorder %s21, 1
      %p58 = por %p56, %p57
      %p60 = scmp.ne.s32.totalorder %s43, %s59
      %p61 = scmp.eq.s32.totalorder %s21, 0
      %p62 = por %p60, %p61
      %s63 = sadd.s32 %s22, %s23
      %s64 = sadd.s32 %s34, %s30
      %s65 = ssub.s32 %s63, %s64
      %p66 = scmp.eq.s32.totalorder %s65, 0
      %s68 = sadd.s32 %s67, 1
      %s69 = scalar_select %p66, %s67, %s68
      %p72 = pneg %p66
      %p73 = scmp.eq.s32.totalorder %s15, 1
      %p74 = por %p72, %p73
      %p75 = scmp.ne.s32.totalorder %s67, %s70
      %p76 = scmp.eq.s32.totalorder %s15, 0
      %p77 = por %p75, %p76
      %p78 = scmp.ne.s32.totalorder %s67, %s70
      %p79 = scmp.eq.s32.totalorder %s20, 1
      %p80 = por %p78, %p79
      %p81 = scmp.ne.s32.totalorder %s70, %s71
      %p82 = scmp.eq.s32.totalorder %s20, 0
      %p83 = por %p81, %p82
      %p84 = scmp.ne.s32.totalorder %s70, %s71
      %p85 = scmp.eq.s32.totalorder %s21, 1
      %p86 = por %p84, %p85
      %p88 = scmp.ne.s32.totalorder %s71, %s87
      %p89 = scmp.eq.s32.totalorder %s21, 0
      %p90 = por %p88, %p89
      %s91 = sadd.s32 %s22, %s23
      %s92 = sadd.s32 %s34, %s30
      %s93 = ssub.s32 %s91, %s92
      %p94 = scmp.eq.s32.totalorder %s93, 0
      %s96 = sadd.s32 %s95, 1
      %s97 = scalar_select %p94, %s95, %s96
      %p100 = pneg %p94
      %p101 = scmp.eq.s32.totalorder %s15, 1
      %p102 = por %p100, %p101
      %p103 = scmp.ne.s32.totalorder %s95, %s98
      %p104 = scmp.eq.s32.totalorder %s15, 0
      %p105 = por %p103, %p104
      %p106 = scmp.ne.s32.totalorder %s95, %s98
      %p107 = scmp.eq.s32.totalorder %s20, 1
      %p108 = por %p106, %p107
      %p109 = scmp.ne.s32.totalorder %s98, %s99
      %p110 = scmp.eq.s32.totalorder %s20, 0
      %p111 = por %p109, %p110
      %p112 = scmp.ne.s32.totalorder %s98, %s99
      %p113 = scmp.eq.s32.totalorder %s21, 1
      %p114 = por %p112, %p113
      %p116 = scmp.ne.s32.totalorder %s99, %s115
      %p117 = scmp.eq.s32.totalorder %s21, 0
      %p118 = por %p116, %p117
      %s119 = sadd.s32 %s22, %s23
      %s120 = sadd.s32 %s34, %s30
      %s121 = ssub.s32 %s119, %s120
      %p122 = scmp.eq.s32.totalorder %s121, 0
      %s124 = sadd.s32 %s123, 1
      %s125 = scalar_select %p122, %s123, %s124
      %p128 = pneg %p122
      %p129 = scmp.eq.s32.totalorder %s15, 1
      %p130 = por %p128, %p129
      %p131 = scmp.ne.s32.totalorder %s123, %s126
      %p132 = scmp.eq.s32.totalorder %s15, 0
      %p133 = por %p131, %p132
      %p134 = scmp.ne.s32.totalorder %s123, %s126
      %p135 = scmp.eq.s32.totalorder %s20, 1
      %p136 = por %p134, %p135
      %p137 = scmp.ne.s32.totalorder %s126, %s127
      %p138 = scmp.eq.s32.totalorder %s20, 0
      %p139 = por %p137, %p138
      %p140 = scmp.ne.s32.totalorder %s126, %s127
      %p141 = scmp.eq.s32.totalorder %s21, 1
      %p142 = por %p140, %p141
      %p144 = scmp.ne.s32.totalorder %s127, %s143
      %p145 = scmp.eq.s32.totalorder %s21, 0
      %p146 = por %p144, %p145
      %s148 = sadd.s32 %s147, 1
      %p151 = scmp.eq.s32.totalorder %s15, 1
      %p152 = scmp.ne.s32.totalorder %s147, %s149
      %p153 = scmp.eq.s32.totalorder %s15, 0
      %p154 = por %p152, %p153
      %p155 = scmp.ne.s32.totalorder %s147, %s149
      %p156 = scmp.eq.s32.totalorder %s20, 1
      %p157 = por %p155, %p156
      %p158 = scmp.ne.s32.totalorder %s149, %s150
      %p159 = scmp.eq.s32.totalorder %s20, 0
      %p160 = por %p158, %p159
      %p161 = scmp.ne.s32.totalorder %s149, %s150
      %p162 = scmp.eq.s32.totalorder %s21, 1
      %p163 = por %p161, %p162
      %p165 = scmp.ne.s32.totalorder %s150, %s164
      %p166 = scmp.eq.s32.totalorder %s21, 0
      %p167 = por %p165, %p166
      %s169 = sadd.s32 %s168, 1
      %p172 = scmp.eq.s32.totalorder %s15, 1
      %p173 = scmp.ne.s32.totalorder %s168, %s170
      %p174 = scmp.eq.s32.totalorder %s15, 0
      %p175 = por %p173, %p174
      %p176 = scmp.ne.s32.totalorder %s168, %s170
      %p177 = scmp.eq.s32.totalorder %s20, 1
      %p178 = por %p176, %p177
      %p179 = scmp.ne.s32.totalorder %s170, %s171
      %p180 = scmp.eq.s32.totalorder %s20, 0
      %p181 = por %p179, %p180
      %p182 = scmp.ne.s32.totalorder %s170, %s171
      %p183 = scmp.eq.s32.totalorder %s21, 1
      %p184 = por %p182, %p183
      %p186 = scmp.ne.s32.totalorder %s171, %s185
      %p187 = scmp.eq.s32.totalorder %s21, 0
      %p188 = por %p186, %p187
      %s189 = ssub.s32 %s22, %s34
      %p190 = scmp.eq.s32.totalorder %s189, 0
      %s192 = sadd.s32 %s191, 1
      %s193 = scalar_select %p190, %s191, %s192
      %p196 = pneg %p190
      %p197 = scmp.eq.s32.totalorder %s15, 1
      %p198 = por %p196, %p197
      %p199 = scmp.ne.s32.totalorder %s191, %s194
      %p200 = scmp.eq.s32.totalorder %s15, 0
      %p201 = por %p199, %p200
      %p202 = scmp.ne.s32.totalorder %s191, %s194
      %p203 = scmp.eq.s32.totalorder %s20, 1
      %p204 = por %p202, %p203
      %p205 = scmp.ne.s32.totalorder %s194, %s195
      %p206 = scmp.eq.s32.totalorder %s20, 0
      %p207 = por %p205, %p206
      %p208 = scmp.ne.s32.totalorder %s194, %s195
      %p209 = scmp.eq.s32.totalorder %s21, 1
      %p210 = por %p208, %p209
      %p212 = scmp.ne.s32.totalorder %s195, %s211
      %p213 = scmp.eq.s32.totalorder %s21, 0
      %p214 = por %p212, %p213
      %p215 = scmp.le.s32.totalorder 1, %s15
      %p216 = scmp.lt.s32.totalorder %s15, 3
      %p217 = pnand %p215, %p216
      %p218 = pneg %p217
      // Predicated region
      $region9: #{tpu_custom_call.1} parent=5 // pred_check
        _
      $region10: #{tpu_custom_call.1} parent=5 // pred_check_branch
        %220 = sbr.rel (%p217) target = $region12
      $region11: #{tpu_custom_call.1} parent=5 // pred_region
        %s221 = ssub.s32 %s15, 1
        // Predicated region
        $region13: #{tpu_custom_call.1} parent=11 // pred_check
          %p222 = pneg %p160
        $region14: #{tpu_custom_call.1} parent=11 // pred_check_branch
          %224 = sbr.rel (%p222) target = $region16
        $region15: #{tpu_custom_call.1} parent=11 // pred_region
          _
        $region16: #{tpu_custom_call.1} parent=11 // pred_fallthru
          _
        // Predicated region
        $region17: #{tpu_custom_call.1} parent=11 // pred_check
          %p225 = pneg %p181
        $region18: #{tpu_custom_call.1} parent=11 // pred_check_branch
          %227 = sbr.rel (%p225) target = $region20
        $region19: #{tpu_custom_call.1} parent=11 // pred_region
          _
        $region20: #{tpu_custom_call.1} parent=11 // pred_fallthru
          _
      $region12: #{tpu_custom_call.1} parent=5 // pred_fallthru
        _
      %p228 = scmp.lt.s32.totalorder %s15, 2
      // Predicated region
      $region21: #{tpu_custom_call.1} parent=5 // pred_check
        %p229 = pneg %p228
      $region22: #{tpu_custom_call.1} parent=5 // pred_check_branch
        %231 = sbr.rel (%p229) target = $region24
      $region23: #{tpu_custom_call.1} parent=5 // pred_region
        // Predicated region
        $region25: #{tpu_custom_call.1} parent=23 // pred_check
          %p232 = pneg %p49
        $region26: #{tpu_custom_call.1} parent=23 // pred_check_branch
          %234 = sbr.rel (%p232) target = $region28
        $region27: #{tpu_custom_call.1} parent=23 // pred_region
          %s235 = sadd.s32 %s22, %s23
          %s236 = smul.u32 32, %s235
          %p237 = scmp.lt.s32.totalorder %s236, 63
          %s238 = scalar_select %p237, %s236, 63
          %s239 = smul.addr %s238, 8
          %s240 = scalar_lea.vmem %s0, %s239
          %s241 = sadd.s32 %s22, %s23
          %s242 = smul.u32 32, %s241
        $region28: #{tpu_custom_call.1} parent=23 // pred_fallthru
          _
        // Predicated region
        $region29: #{tpu_custom_call.1} parent=23 // pred_check
          %p243 = pneg %p77
        $region30: #{tpu_custom_call.1} parent=23 // pred_check_branch
          %245 = sbr.rel (%p243) target = $region32
        $region31: #{tpu_custom_call.1} parent=23 // pred_region
          %s246 = sadd.s32 %s22, %s23
          %s247 = smul.u32 32, %s246
          %p248 = scmp.lt.s32.totalorder %s247, 63
          %s249 = scalar_select %p248, %s247, 63
          %s250 = smul.addr %s249, 8
          %s251 = scalar_lea.vmem %s1, %s250
          %s252 = sadd.s32 %s22, %s23
          %s253 = smul.u32 32, %s252
        $region32: #{tpu_custom_call.1} parent=23 // pred_fallthru
          _
        // Predicated region
        $region33: #{tpu_custom_call.1} parent=23 // pred_check
          %p254 = pneg %p105
        $region34: #{tpu_custom_call.1} parent=23 // pred_check_branch
          %256 = sbr.rel (%p254) target = $region36
        $region35: #{tpu_custom_call.1} parent=23 // pred_region
          %s257 = sadd.s32 %s22, %s23
          %s258 = smul.u32 32, %s257
          %p259 = scmp.lt.s32.totalorder %s258, 63
          %s260 = scalar_select %p259, %s258, 63
          %s261 = smul.addr %s260, 8
          %s262 = scalar_lea.vmem %s2, %s261
          %s263 = sadd.s32 %s22, %s23
          %s264 = smul.u32 32, %s263
        $region36: #{tpu_custom_call.1} parent=23 // pred_fallthru
          _
        // Predicated region
        $region37: #{tpu_custom_call.1} parent=23 // pred_check
          %p265 = pneg %p133
        $region38: #{tpu_custom_call.1} parent=23 // pred_check_branch
          %267 = sbr.rel (%p265) target = $region40
        $region39: #{tpu_custom_call.1} parent=23 // pred_region
          %s268 = sadd.s32 %s22, %s23
          %s269 = smul.u32 2, %s268
          %p270 = scmp.lt.s32.totalorder %s269, 3
          %s271 = scalar_select %p270, %s269, 3
          %s272 = scalar_lea.vmem %s3, %s271
          %s273 = sadd.s32 %s22, %s23
          %s274 = smul.u32 2, %s273
        $region40: #{tpu_custom_call.1} parent=23 // pred_fallthru
          _
      $region24: #{tpu_custom_call.1} parent=5 // pred_fallthru
        _
      %p275 = scmp.le.s32.totalorder 1, %s15
      %p276 = scmp.lt.s32.totalorder %s15, 3
      %p277 = pnand %p275, %p276
      %p278 = pneg %p277
      // Predicated region
      $region41: #{tpu_custom_call.1} parent=5 // pred_check
        _
      $region42: #{tpu_custom_call.1} parent=5 // pred_check_branch
        %280 = sbr.rel (%p277) target = $region44
      $region43: #{tpu_custom_call.1} parent=5 // pred_region
        %s281 = ssub.s32 %s15, 1
        %s282 = sadd.s32 %s24, %s25
        %s283 = smul.u32 32, %s282
        %p284 = scmp.lt.s32.totalorder %s283, 63
        %s285 = scalar_select %p284, %s283, 63
        %s286 = smul.addr %s285, 8
        %s287 = scalar_lea.vmem %s0, %s286
        %p288 = pneg %p55
        %p289 = pneg %p52
        %s290 = sadd.s32 %s24, %s25
        %s291 = smul.u32 32, %s290
        %p292 = scmp.lt.s32.totalorder %s291, 63
        %s293 = scalar_select %p292, %s291, 63
        %s294 = smul.addr %s293, 8
        %s295 = scalar_lea.vmem %s1, %s294
        %p296 = pneg %p83
        %p297 = pneg %p80
        %s298 = sadd.s32 %s24, %s25
        %s299 = smul.u32 32, %s298
        %p300 = scmp.lt.s32.totalorder %s299, 63
        %s301 = scalar_select %p300, %s299, 63
        %s302 = smul.addr %s301, 8
        %s303 = scalar_lea.vmem %s2, %s302
        %p304 = pneg %p111
        %p305 = pneg %p108
        %s306 = sadd.s32 %s24, %s25
        %s307 = smul.u32 2, %s306
        %p308 = scmp.lt.s32.totalorder %s307, 3
        %s309 = scalar_select %p308, %s307, 3
        %s310 = scalar_lea.vmem %s3, %s309
        %p311 = pneg %p139
        %p312 = pneg %p136
        %p313 = pneg %p160
        %p314 = pneg %p157
        %p315 = pneg %p181
        %p316 = pneg %p178
        %p317 = pneg %p207
        %p318 = pneg %p204
        %s319 = sand.u32 %s194, 1
        %s320 = scalar_lea.sflag [#allocation3], %s319
        %s321 = sand.u32 %s194, 1
        %s322 = smul.addr %s321, 16
        %s323 = scalar_lea.vmem [#allocation2], %s322
        %s324 = sadd.s32 %s24, %s25
        %s325 = smul.u32 32, %s324
        %p326 = scmp.lt.s32.totalorder %s325, 63
        %s327 = scalar_select %p326, %s325, 63
        %s328 = smul.addr %s327, 8
        %s329 = scalar_lea.vmem %s0, %s328
        %s330 = sadd.s32 %s24, %s25
        %s331 = smul.u32 32, %s330
        %s332 = sadd.s32 %s24, %s25
        %s333 = smul.u32 32, %s332
        %p334 = scmp.lt.s32.totalorder %s333, 63
        %s335 = scalar_select %p334, %s333, 63
        %s336 = smul.addr %s335, 8
        %s337 = scalar_lea.vmem %s1, %s336
        %s338 = sadd.s32 %s24, %s25
        %s339 = smul.u32 32, %s338
        %s340 = sadd.s32 %s24, %s25
        %s341 = smul.u32 32, %s340
        %p342 = scmp.lt.s32.totalorder %s341, 63
        %s343 = scalar_select %p342, %s341, 63
        %s344 = smul.addr %s343, 8
        %s345 = scalar_lea.vmem %s2, %s344
        %s346 = sadd.s32 %s24, %s25
        %s347 = smul.u32 32, %s346
        %s348 = sadd.s32 %s24, %s25
        %s349 = smul.u32 2, %s348
        %p350 = scmp.lt.s32.totalorder %s349, 3
        %s351 = scalar_select %p350, %s349, 3
        %s352 = scalar_lea.vmem %s3, %s351
        %s353 = sadd.s32 %s24, %s25
        %s354 = smul.u32 2, %s353
        %p355 = scmp.eq.s32.totalorder %s25, 0
        // Predicated region
        $region45: #{tpu_custom_call.1} parent=43 // pred_check
          %p356 = pneg %p355
        $region46: #{tpu_custom_call.1} parent=43 // pred_check_branch
          %358 = sbr.rel (%p356) target = $region48
        $region47: #{tpu_custom_call.1} parent=43 // pred_region
          %359 = vst [vmem:[%s323] sm:$0xff] 0.0
          %360 = vst [vmem:[%s323 + $0x8] sm:$0xff] 0.0
        $region48: #{tpu_custom_call.1} parent=43 // pred_fallthru
          _
        %v361 = vld [vmem:[%s329] sm:$0xff]
        %v362 = vld [vmem:[%s329 + $0x8] sm:$0xff]
        %v363 = vld [vmem:[%s329 + $0x10] sm:$0xff]
        %v364 = vld [vmem:[%s329 + $0x18] sm:$0xff]
        %v365 = vld [vmem:[%s329 + $0x20] sm:$0xff]
        %v366 = vld [vmem:[%s329 + $0x28] sm:$0xff]
        %v367 = vld [vmem:[%s329 + $0x30] sm:$0xff]
        %v368 = vld [vmem:[%s329 + $0x38] sm:$0xff]
        %v369 = vld [vmem:[%s329 + $0x40] sm:$0xff]
        %v370 = vld [vmem:[%s329 + $0x48] sm:$0xff]
        %v371 = vld [vmem:[%s329 + $0x50] sm:$0xff]
        %v372 = vld [vmem:[%s329 + $0x58] sm:$0xff]
        %v373 = vld [vmem:[%s329 + $0x60] sm:$0xff]
        %v374 = vld [vmem:[%s329 + $0x68] sm:$0xff]
        %v375 = vld [vmem:[%s329 + $0x70] sm:$0xff]
        %v376 = vld [vmem:[%s329 + $0x78] sm:$0xff]
        %v377 = vld [vmem:[%s329 + $0x80] sm:$0xff]
        %v378 = vld [vmem:[%s329 + $0x88] sm:$0xff]
        %v379 = vld [vmem:[%s329 + $0x90] sm:$0xff]
        %v380 = vld [vmem:[%s329 + $0x98] sm:$0xff]
        %v381 = vld [vmem:[%s329 + $0xa0] sm:$0xff]
        %v382 = vld [vmem:[%s329 + $0xa8] sm:$0xff]
        %v383 = vld [vmem:[%s329 + $0xb0] sm:$0xff]
        %v384 = vld [vmem:[%s329 + $0xb8] sm:$0xff]
        %v385 = vld [vmem:[%s329 + $0xc0] sm:$0xff]
        %v386 = vld [vmem:[%s329 + $0xc8] sm:$0xff]
        %v387 = vld [vmem:[%s329 + $0xd0] sm:$0xff]
        %v388 = vld [vmem:[%s329 + $0xd8] sm:$0xff]
        %v389 = vld [vmem:[%s329 + $0xe0] sm:$0xff]
        %v390 = vld [vmem:[%s329 + $0xe8] sm:$0xff]
        %v391 = vld [vmem:[%s329 + $0xf0] sm:$0xff]
        %v392 = vld [vmem:[%s329 + $0xf8] sm:$0xff]
        %v393 = vld [vmem:[%s337] sm:$0xff]
        %v394 = vld [vmem:[%s337 + $0x8] sm:$0xff]
        %v395 = vld [vmem:[%s337 + $0x10] sm:$0xff]
        %v396 = vld [vmem:[%s337 + $0x18] sm:$0xff]
        %v397 = vld [vmem:[%s337 + $0x20] sm:$0xff]
        %v398 = vld [vmem:[%s337 + $0x28] sm:$0xff]
        %v399 = vld [vmem:[%s337 + $0x30] sm:$0xff]
        %v400 = vld [vmem:[%s337 + $0x38] sm:$0xff]
        %v401 = vld [vmem:[%s337 + $0x40] sm:$0xff]
        %v402 = vld [vmem:[%s337 + $0x48] sm:$0xff]
        %v403 = vld [vmem:[%s337 + $0x50] sm:$0xff]
        %v404 = vld [vmem:[%s337 + $0x58] sm:$0xff]
        %v405 = vld [vmem:[%s337 + $0x60] sm:$0xff]
        %v406 = vld [vmem:[%s337 + $0x68] sm:$0xff]
        %v407 = vld [vmem:[%s337 + $0x70] sm:$0xff]
        %v408 = vld [vmem:[%s337 + $0x78] sm:$0xff]
        %v409 = vld [vmem:[%s337 + $0x80] sm:$0xff]
        %v410 = vld [vmem:[%s337 + $0x88] sm:$0xff]
        %v411 = vld [vmem:[%s337 + $0x90] sm:$0xff]
        %v412 = vld [vmem:[%s337 + $0x98] sm:$0xff]
        %v413 = vld [vmem:[%s337 + $0xa0] sm:$0xff]
        %v414 = vld [vmem:[%s337 + $0xa8] sm:$0xff]
        %v415 = vld [vmem:[%s337 + $0xb0] sm:$0xff]
        %v416 = vld [vmem:[%s337 + $0xb8] sm:$0xff]
        %v417 = vld [vmem:[%s337 + $0xc0] sm:$0xff]
        %v418 = vld [vmem:[%s337 + $0xc8] sm:$0xff]
        %v419 = vld [vmem:[%s337 + $0xd0] sm:$0xff]
        %v420 = vld [vmem:[%s337 + $0xd8] sm:$0xff]
        %v421 = vld [vmem:[%s337 + $0xe0] sm:$0xff]
        %v422 = vld [vmem:[%s337 + $0xe8] sm:$0xff]
        %v423 = vld [vmem:[%s337 + $0xf0] sm:$0xff]
        %v424 = vld [vmem:[%s337 + $0xf8] sm:$0xff]
        %426 = vset.pattern.permute.xlu0 0
        %427 = vperm.xlu0 %426, %v393
        %v428 = vpop.permute.xlu0 %427
        %431 = vset.pattern.permute.xlu0 0
        %432 = vperm.xlu0 %431, %v394
        %v433 = vpop.permute.xlu0 %432
        %436 = vset.pattern.permute.xlu0 0
        %437 = vperm.xlu0 %436, %v395
        %v438 = vpop.permute.xlu0 %437
        %441 = vset.pattern.permute.xlu0 0
        %442 = vperm.xlu0 %441, %v396
        %v443 = vpop.permute.xlu0 %442
        %446 = vset.pattern.permute.xlu0 0
        %447 = vperm.xlu0 %446, %v397
        %v448 = vpop.permute.xlu0 %447
        %451 = vset.pattern.permute.xlu0 0
        %452 = vperm.xlu0 %451, %v398
        %v453 = vpop.permute.xlu0 %452
        %456 = vset.pattern.permute.xlu0 0
        %457 = vperm.xlu0 %456, %v399
        %v458 = vpop.permute.xlu0 %457
        %461 = vset.pattern.permute.xlu0 0
        %462 = vperm.xlu0 %461, %v400
        %v463 = vpop.permute.xlu0 %462
        %466 = vset.pattern.permute.xlu0 0
        %467 = vperm.xlu0 %466, %v401
        %v468 = vpop.permute.xlu0 %467
        %471 = vset.pattern.permute.xlu0 0
        %472 = vperm.xlu0 %471, %v402
        %v473 = vpop.permute.xlu0 %472
        %476 = vset.pattern.permute.xlu0 0
        %477 = vperm.xlu0 %476, %v403
        %v478 = vpop.permute.xlu0 %477
        %481 = vset.pattern.permute.xlu0 0
        %482 = vperm.xlu0 %481, %v404
        %v483 = vpop.permute.xlu0 %482
        %486 = vset.pattern.permute.xlu0 0
        %487 = vperm.xlu0 %486, %v405
        %v488 = vpop.permute.xlu0 %487
        %491 = vset.pattern.permute.xlu0 0
        %492 = vperm.xlu0 %491, %v406
        %v493 = vpop.permute.xlu0 %492
        %496 = vset.pattern.permute.xlu0 0
        %497 = vperm.xlu0 %496, %v407
        %v498 = vpop.permute.xlu0 %497
        %501 = vset.pattern.permute.xlu0 0
        %502 = vperm.xlu0 %501, %v408
        %v503 = vpop.permute.xlu0 %502
        %506 = vset.pattern.permute.xlu0 0
        %507 = vperm.xlu0 %506, %v409
        %v508 = vpop.permute.xlu0 %507
        %511 = vset.pattern.permute.xlu0 0
        %512 = vperm.xlu0 %511, %v410
        %v513 = vpop.permute.xlu0 %512
        %516 = vset.pattern.permute.xlu0 0
        %517 = vperm.xlu0 %516, %v411
        %v518 = vpop.permute.xlu0 %517
        %521 = vset.pattern.permute.xlu0 0
        %522 = vperm.xlu0 %521, %v412
        %v523 = vpop.permute.xlu0 %522
        %526 = vset.pattern.permute.xlu0 0
        %527 = vperm.xlu0 %526, %v413
        %v528 = vpop.permute.xlu0 %527
        %531 = vset.pattern.permute.xlu0 0
        %532 = vperm.xlu0 %531, %v414
        %v533 = vpop.permute.xlu0 %532
        %536 = vset.pattern.permute.xlu0 0
        %537 = vperm.xlu0 %536, %v415
        %v538 = vpop.permute.xlu0 %537
        %541 = vset.pattern.permute.xlu0 0
        %542 = vperm.xlu0 %541, %v416
        %v543 = vpop.permute.xlu0 %542
        %546 = vset.pattern.permute.xlu0 0
        %547 = vperm.xlu0 %546, %v417
        %v548 = vpop.permute.xlu0 %547
        %551 = vset.pattern.permute.xlu0 0
        %552 = vperm.xlu0 %551, %v418
        %v553 = vpop.permute.xlu0 %552
        %556 = vset.pattern.permute.xlu0 0
        %557 = vperm.xlu0 %556, %v419
        %v558 = vpop.permute.xlu0 %557
        %561 = vset.pattern.permute.xlu0 0
        %562 = vperm.xlu0 %561, %v420
        %v563 = vpop.permute.xlu0 %562
        %566 = vset.pattern.permute.xlu0 0
        %567 = vperm.xlu0 %566, %v421
        %v568 = vpop.permute.xlu0 %567
        %571 = vset.pattern.permute.xlu0 0
        %572 = vperm.xlu0 %571, %v422
        %v573 = vpop.permute.xlu0 %572
        %576 = vset.pattern.permute.xlu0 0
        %577 = vperm.xlu0 %576, %v423
        %v578 = vpop.permute.xlu0 %577
        %581 = vset.pattern.permute.xlu0 0
        %582 = vperm.xlu0 %581, %v424
        %v583 = vpop.permute.xlu0 %582
        %v585 = vmul.f32 %v428, %v361
        %v586 = vmul.f32 %v433, %v362
        %v587 = vmul.f32 %v438, %v363
        %v588 = vmul.f32 %v443, %v364
        %v589 = vmul.f32 %v448, %v365
        %v590 = vmul.f32 %v453, %v366
        %v591 = vmul.f32 %v458, %v367
        %v592 = vmul.f32 %v463, %v368
        %v593 = vmul.f32 %v468, %v369
        %v594 = vmul.f32 %v473, %v370
        %v595 = vmul.f32 %v478, %v371
        %v596 = vmul.f32 %v483, %v372
        %v597 = vmul.f32 %v488, %v373
        %v598 = vmul.f32 %v493, %v374
        %v599 = vmul.f32 %v498, %v375
        %v600 = vmul.f32 %v503, %v376
        %v601 = vmul.f32 %v508, %v377
        %v602 = vmul.f32 %v513, %v378
        %v603 = vmul.f32 %v518, %v379
        %v604 = vmul.f32 %v523, %v380
        %v605 = vmul.f32 %v528, %v381
        %v606 = vmul.f32 %v533, %v382
        %v607 = vmul.f32 %v538, %v383
        %v608 = vmul.f32 %v543, %v384
        %v609 = vmul.f32 %v548, %v385
        %v610 = vmul.f32 %v553, %v386
        %v611 = vmul.f32 %v558, %v387
        %v612 = vmul.f32 %v563, %v388
        %v613 = vmul.f32 %v568, %v389
        %v614 = vmul.f32 %v573, %v390
        %v615 = vmul.f32 %v578, %v391
        %v616 = vmul.f32 %v583, %v392
        %v617 = vld [vmem:[%s4] sm:$0xff]
        %v618 = vld [vmem:[%s4 + $0x8] sm:$0xff]
        %619 = vset.pattern.permute.xlu0 1
        %620 = vperm.xlu0 %619, %v393
        %v621 = vpop.permute.xlu0 %620
        %623 = vset.pattern.permute.xlu0 1
        %624 = vperm.xlu0 %623, %v394
        %v625 = vpop.permute.xlu0 %624
        %627 = vset.pattern.permute.xlu0 1
        %628 = vperm.xlu0 %627, %v395
        %v629 = vpop.permute.xlu0 %628
        %631 = vset.pattern.permute.xlu0 1
        %632 = vperm.xlu0 %631, %v396
        %v633 = vpop.permute.xlu0 %632
        %635 = vset.pattern.permute.xlu0 1
        %636 = vperm.xlu0 %635, %v397
        %v637 = vpop.permute.xlu0 %636
        %639 = vset.pattern.permute.xlu0 1
        %640 = vperm.xlu0 %639, %v398
        %v641 = vpop.permute.xlu0 %640
        %643 = vset.pattern.permute.xlu0 1
        %644 = vperm.xlu0 %643, %v399
        %v645 = vpop.permute.xlu0 %644
        %647 = vset.pattern.permute.xlu0 1
        %648 = vperm.xlu0 %647, %v400
        %v649 = vpop.permute.xlu0 %648
        %651 = vset.pattern.permute.xlu0 1
        %652 = vperm.xlu0 %651, %v401
        %v653 = vpop.permute.xlu0 %652
        %655 = vset.pattern.permute.xlu0 1
        %656 = vperm.xlu0 %655, %v402
        %v657 = vpop.permute.xlu0 %656
        %659 = vset.pattern.permute.xlu0 1
        %660 = vperm.xlu0 %659, %v403
        %v661 = vpop.permute.xlu0 %660
        %663 = vset.pattern.permute.xlu0 1
        %664 = vperm.xlu0 %663, %v404
        %v665 = vpop.permute.xlu0 %664
        %667 = vset.pattern.permute.xlu0 1
        %668 = vperm.xlu0 %667, %v405
        %v669 = vpop.permute.xlu0 %668
        %671 = vset.pattern.permute.xlu0 1
        %672 = vperm.xlu0 %671, %v406
        %v673 = vpop.permute.xlu0 %672
        %675 = vset.pattern.permute.xlu0 1
        %676 = vperm.xlu0 %675, %v407
        %v677 = vpop.permute.xlu0 %676
        %679 = vset.pattern.permute.xlu0 1
        %680 = vperm.xlu0 %679, %v408
        %v681 = vpop.permute.xlu0 %680
        %683 = vset.pattern.permute.xlu0 1
        %684 = vperm.xlu0 %683, %v409
        %v685 = vpop.permute.xlu0 %684
        %687 = vset.pattern.permute.xlu0 1
        %688 = vperm.xlu0 %687, %v410
        %v689 = vpop.permute.xlu0 %688
        %691 = vset.pattern.permute.xlu0 1
        %692 = vperm.xlu0 %691, %v411
        %v693 = vpop.permute.xlu0 %692
        %695 = vset.pattern.permute.xlu0 1
        %696 = vperm.xlu0 %695, %v412
        %v697 = vpop.permute.xlu0 %696
        %699 = vset.pattern.permute.xlu0 1
        %700 = vperm.xlu0 %699, %v413
        %v701 = vpop.permute.xlu0 %700
        %703 = vset.pattern.permute.xlu0 1
        %704 = vperm.xlu0 %703, %v414
        %v705 = vpop.permute.xlu0 %704
        %707 = vset.pattern.permute.xlu0 1
        %708 = vperm.xlu0 %707, %v415
        %v709 = vpop.permute.xlu0 %708
        %711 = vset.pattern.permute.xlu0 1
        %712 = vperm.xlu0 %711, %v416
        %v713 = vpop.permute.xlu0 %712
        %715 = vset.pattern.permute.xlu0 1
        %716 = vperm.xlu0 %715, %v417
        %v717 = vpop.permute.xlu0 %716
        %719 = vset.pattern.permute.xlu0 1
        %720 = vperm.xlu0 %719, %v418
        %v721 = vpop.permute.xlu0 %720
        %723 = vset.pattern.permute.xlu0 1
        %724 = vperm.xlu0 %723, %v419
        %v725 = vpop.permute.xlu0 %724
        %727 = vset.pattern.permute.xlu0 1
        %728 = vperm.xlu0 %727, %v420
        %v729 = vpop.permute.xlu0 %728
        %731 = vset.pattern.permute.xlu0 1
        %732 = vperm.xlu0 %731, %v421
        %v733 = vpop.permute.xlu0 %732
        %735 = vset.pattern.permute.xlu0 1
        %736 = vperm.xlu0 %735, %v422
        %v737 = vpop.permute.xlu0 %736
        %739 = vset.pattern.permute.xlu0 1
        %740 = vperm.xlu0 %739, %v423
        %v741 = vpop.permute.xlu0 %740
        %743 = vset.pattern.permute.xlu0 1
        %744 = vperm.xlu0 %743, %v424
        %v745 = vpop.permute.xlu0 %744
        %v747 = vmul.f32 %v621, %v361
        %v748 = vmul.f32 %v625, %v362
        %v749 = vmul.f32 %v629, %v363
        %v750 = vmul.f32 %v633, %v364
        %v751 = vmul.f32 %v637, %v365
        %v752 = vmul.f32 %v641, %v366
        %v753 = vmul.f32 %v645, %v367
        %v754 = vmul.f32 %v649, %v368
        %v755 = vmul.f32 %v653, %v369
        %v756 = vmul.f32 %v657, %v370
        %v757 = vmul.f32 %v661, %v371
        %v758 = vmul.f32 %v665, %v372
        %v759 = vmul.f32 %v669, %v373
        %v760 = vmul.f32 %v673, %v374
        %v761 = vmul.f32 %v677, %v375
        %v762 = vmul.f32 %v681, %v376
        %v763 = vmul.f32 %v685, %v377
        %v764 = vmul.f32 %v689, %v378
        %v765 = vmul.f32 %v693, %v379
        %v766 = vmul.f32 %v697, %v380
        %v767 = vmul.f32 %v701, %v381
        %v768 = vmul.f32 %v705, %v382
        %v769 = vmul.f32 %v709, %v383
        %v770 = vmul.f32 %v713, %v384
        %v771 = vmul.f32 %v717, %v385
        %v772 = vmul.f32 %v721, %v386
        %v773 = vmul.f32 %v725, %v387
        %v774 = vmul.f32 %v729, %v388
        %v775 = vmul.f32 %v733, %v389
        %v776 = vmul.f32 %v737, %v390
        %v777 = vmul.f32 %v741, %v391
        %v778 = vmul.f32 %v745, %v392
        %v779 = vld [vmem:[%s4 + $0x10] sm:$0xff]
        %v780 = vld [vmem:[%s4 + $0x18] sm:$0xff]
        %vm781 = vcmask 130048
        %v783 = vsel %vm781, %v747, 0
        %v786 = vsel %vm781, %v748, 0
        %v789 = vsel %vm781, %v749, 0
        %v792 = vsel %vm781, %v750, 0
        %v795 = vsel %vm781, %v751, 0
        %v798 = vsel %vm781, %v752, 0
        %v801 = vsel %vm781, %v753, 0
        %v804 = vsel %vm781, %v754, 0
        %v807 = vsel %vm781, %v755, 0
        %v810 = vsel %vm781, %v756, 0
        %v813 = vsel %vm781, %v757, 0
        %v816 = vsel %vm781, %v758, 0
        %v819 = vsel %vm781, %v759, 0
        %v822 = vsel %vm781, %v760, 0
        %v825 = vsel %vm781, %v761, 0
        %v828 = vsel %vm781, %v762, 0
        %v831 = vsel %vm781, %v763, 0
        %v834 = vsel %vm781, %v764, 0
        %v837 = vsel %vm781, %v765, 0
        %v840 = vsel %vm781, %v766, 0
        %v843 = vsel %vm781, %v767, 0
        %v846 = vsel %vm781, %v768, 0
        %v849 = vsel %vm781, %v769, 0
        %v852 = vsel %vm781, %v770, 0
        %v855 = vsel %vm781, %v771, 0
        %v858 = vsel %vm781, %v772, 0
        %v861 = vsel %vm781, %v773, 0
        %v864 = vsel %vm781, %v774, 0
        %v867 = vsel %vm781, %v775, 0
        %v870 = vsel %vm781, %v776, 0
        %v873 = vsel %vm781, %v777, 0
        %v876 = vsel %vm781, %v778, 0
        %878 = vmatprep.subr.mxu0 0.0
        %879 = vmatpush1.msra.mxu0 %v779
        %880 = vmatprep.subr.mxu0 0.0
        %881 = vmatpush1.msra.mxu0 %v780
        %882 = vmatprep.subr.mxu0 0.0
        %883 = vmatpush1.msra.mxu0 0.0
        %884 = vmatprep.subr.mxu0 0.0
        %885 = vmatpush1.msra.mxu0 0.0
        %886 = vmatprep.subr.mxu0 0.0
        %887 = vmatpush1.msra.mxu0 0.0
        %888 = vmatprep.subr.mxu0 0.0
        %889 = vmatpush1.msra.mxu0 0.0
        %890 = vmatprep.subr.mxu0 0.0
        %891 = vmatpush1.msra.mxu0 0.0
        %892 = vmatprep.subr.mxu0 0.0
        %893 = vmatpush1.msra.mxu0 0.0
        %894 = vmatprep.subr.mxu0 0.0
        %895 = vmatpush1.msra.mxu0 0.0
        %896 = vmatprep.subr.mxu0 0.0
        %897 = vmatpush1.msra.mxu0 0.0
        %898 = vmatprep.subr.mxu0 0.0
        %899 = vmatpush1.msra.mxu0 0.0
        %900 = vmatprep.subr.mxu0 0.0
        %901 = vmatpush1.msra.mxu0 0.0
        %902 = vmatprep.subr.mxu0 0.0
        %903 = vmatpush1.msra.mxu0 0.0
        %904 = vmatprep.subr.mxu0 0.0
        %905 = vmatpush1.msra.mxu0 0.0
        %906 = vmatprep.subr.mxu0 0.0
        %907 = vmatpush1.msra.mxu0 0.0
        %908 = vmatprep.subr.mxu0 0.0
        %909 = vmatpush1.msra.mxu0 0.0
        %910 = vmatprep.subr.mxu0 0.0
        %911 = vmatpush1.msra.mxu0 0.0
        %912 = vmatprep.subr.mxu0 0.0
        %913 = vmatpush1.msra.mxu0 0.0
        %914 = vmatprep.subr.mxu0 0.0
        %915 = vmatpush1.msra.mxu0 0.0
        %916 = vmatprep.subr.mxu0 0.0
        %917 = vmatpush1.msra.mxu0 0.0
        %918 = vmatprep.subr.mxu0 0.0
        %919 = vmatpush1.msra.mxu0 0.0
        %920 = vmatprep.subr.mxu0 0.0
        %921 = vmatpush1.msra.mxu0 0.0
        %922 = vmatprep.subr.mxu0 0.0
        %923 = vmatpush1.msra.mxu0 0.0
        %924 = vmatprep.subr.mxu0 0.0
        %925 = vmatpush1.msra.mxu0 0.0
        %926 = vmatprep.subr.mxu0 0.0
        %927 = vmatpush1.msra.mxu0 0.0
        %928 = vmatprep.subr.mxu0 0.0
        %929 = vmatpush1.msra.mxu0 0.0
        %930 = vmatprep.subr.mxu0 0.0
        %931 = vmatpush1.msra.mxu0 0.0
        %932 = vmatprep.subr.mxu0 0.0
        %933 = vmatpush1.msra.mxu0 0.0
        %934 = vmatprep.subr.mxu0 0.0
        %935 = vmatpush1.msra.mxu0 0.0
        %936 = vmatprep.subr.mxu0 0.0
        %937 = vmatpush1.msra.mxu0 0.0
        %938 = vmatprep.subr.mxu0 0.0
        %939 = vmatpush1.msra.mxu0 0.0
        %940 = vmatprep.subr.mxu0 0.0
        %941 = vmatpush1.msra.mxu0 0.0
        %942 = vmatprep.mubr.f32.mxu0 0.0
        %943 = vmatmul.mubr.f32.gmra.mrb[0].mxu0 %v783
        %v944 = vpop.f32.mrb[0].mxu0
        %v945 = vadd.f32 0.0, %v944
        %v946 = vpop.f32.mrb[0].mxu0
        %947 = vmatprep.mubr.f32.mxu0 0.0
        %948 = vmatmul.mubr.f32.gmra.mrb[0].mxu0 %v786
        %v949 = vpop.f32.mrb[0].mxu0
        %v950 = vadd.f32 0.0, %v949
        %v951 = vpop.f32.mrb[0].mxu0
        %952 = vmatprep.mubr.f32.mxu0 0.0
        %953 = vmatmul.mubr.f32.gmra.mrb[0].mxu0 %v789
        %v954 = vpop.f32.mrb[0].mxu0
        %v955 = vadd.f32 0.0, %v954
        %v956 = vpop.f32.mrb[0].mxu0
        %957 = vmatprep.mubr.f32.mxu0 0.0
        %958 = vmatmul.mubr.f32.gmra.mrb[0].mxu0 %v792
        %v959 = vpop.f32.mrb[0].mxu0
        %v960 = vadd.f32 0.0, %v959
        %v961 = vpop.f32.mrb[0].mxu0
        %962 = vmatprep.mubr.f32.mxu0 0.0
        %963 = vmatmul.mubr.f32.gmra.mrb[0].mxu0 %v795
        %v964 = vpop.f32.mrb[0].mxu0
        %v965 = vadd.f32 0.0, %v964
        %v966 = vpop.f32.mrb[0].mxu0
        %967 = vmatprep.mubr.f32.mxu0 0.0
        %968 = vmatmul.mubr.f32.gmra.mrb[0].mxu0 %v798
        %v969 = vpop.f32.mrb[0].mxu0
        %v970 = vadd.f32 0.0, %v969
        %v971 = vpop.f32.mrb[0].mxu0
        %972 = vmatprep.mubr.f32.mxu0 0.0
        %973 = vmatmul.mubr.f32.gmra.mrb[0].mxu0 %v801
        %v974 = vpop.f32.mrb[0].mxu0
        %v975 = vadd.f32 0.0, %v974
        %v976 = vpop.f32.mrb[0].mxu0
        %977 = vmatprep.mubr.f32.mxu0 0.0
        %978 = vmatmul.mubr.f32.gmra.mrb[0].mxu0 %v804
        %v979 = vpop.f32.mrb[0].mxu0
        %v980 = vadd.f32 0.0, %v979
        %v981 = vpop.f32.mrb[0].mxu0
        %982 = vmatprep.mubr.f32.mxu0 0.0
        %983 = vmatmul.mubr.f32.gmra.mrb[0].mxu0 %v807
        %v984 = vpop.f32.mrb[0].mxu0
        %v985 = vadd.f32 0.0, %v984
        %v986 = vpop.f32.mrb[0].mxu0
        %987 = vmatprep.mubr.f32.mxu0 0.0
        %988 = vmatmul.mubr.f32.gmra.mrb[0].mxu0 %v810
        %v989 = vpop.f32.mrb[0].mxu0
        %v990 = vadd.f32 0.0, %v989
        %v991 = vpop.f32.mrb[0].mxu0
        %992 = vmatprep.mubr.f32.mxu0 0.0
        %993 = vmatmul.mubr.f32.gmra.mrb[0].mxu0 %v813
        %v994 = vpop.f32.mrb[0].mxu0
        %v995 = vadd.f32 0.0, %v994
        %v996 = vpop.f32.mrb[0].mxu0
        %997 = vmatprep.mubr.f32.mxu0 0.0
        %998 = vmatmul.mubr.f32.gmra.mrb[0].mxu0 %v816
        %v999 = vpop.f32.mrb[0].mxu0
        %v1000 = vadd.f32 0.0, %v999
        %v1001 = vpop.f32.mrb[0].mxu0
        %1002 = vmatprep.mubr.f32.mxu0 0.0
        %1003 = vmatmul.mubr.f32.gmra.mrb[0].mxu0 %v819
        %v1004 = vpop.f32.mrb[0].mxu0
        %v1005 = vadd.f32 0.0, %v1004
        %v1006 = vpop.f32.mrb[0].mxu0
        %1007 = vmatprep.mubr.f32.mxu0 0.0
        %1008 = vmatmul.mubr.f32.gmra.mrb[0].mxu0 %v822
        %v1009 = vpop.f32.mrb[0].mxu0
        %v1010 = vadd.f32 0.0, %v1009
        %v1011 = vpop.f32.mrb[0].mxu0
        %1012 = vmatprep.mubr.f32.mxu0 0.0
        %1013 = vmatmul.mubr.f32.gmra.mrb[0].mxu0 %v825
        %v1014 = vpop.f32.mrb[0].mxu0
        %v1015 = vadd.f32 0.0, %v1014
        %v1016 = vpop.f32.mrb[0].mxu0
        %1017 = vmatprep.mubr.f32.mxu0 0.0
        %1018 = vmatmul.mubr.f32.gmra.mrb[0].mxu0 %v828
        %v1019 = vpop.f32.mrb[0].mxu0
        %v1020 = vadd.f32 0.0, %v1019
        %v1021 = vpop.f32.mrb[0].mxu0
        %1022 = vmatprep.mubr.f32.mxu0 0.0
        %1023 = vmatmul.mubr.f32.gmra.mrb[0].mxu0 %v831
        %v1024 = vpop.f32.mrb[0].mxu0
        %v1025 = vadd.f32 0.0, %v1024
        %v1026 = vpop.f32.mrb[0].mxu0
        %1027 = vmatprep.mubr.f32.mxu0 0.0
        %1028 = vmatmul.mubr.f32.gmra.mrb[0].mxu0 %v834
        %v1029 = vpop.f32.mrb[0].mxu0
        %v1030 = vadd.f32 0.0, %v1029
        %v1031 = vpop.f32.mrb[0].mxu0
        %1032 = vmatprep.mubr.f32.mxu0 0.0
        %1033 = vmatmul.mubr.f32.gmra.mrb[0].mxu0 %v837
        %v1034 = vpop.f32.mrb[0].mxu0
        %v1035 = vadd.f32 0.0, %v1034
        %v1036 = vpop.f32.mrb[0].mxu0
        %1037 = vmatprep.mubr.f32.mxu0 0.0
        %1038 = vmatmul.mubr.f32.gmra.mrb[0].mxu0 %v840
        %v1039 = vpop.f32.mrb[0].mxu0
        %v1040 = vadd.f32 0.0, %v1039
        %v1041 = vpop.f32.mrb[0].mxu0
        %1042 = vmatprep.mubr.f32.mxu0 0.0
        %1043 = vmatmul.mubr.f32.gmra.mrb[0].mxu0 %v843
        %v1044 = vpop.f32.mrb[0].mxu0
        %v1045 = vadd.f32 0.0, %v1044
        %v1046 = vpop.f32.mrb[0].mxu0
        %1047 = vmatprep.mubr.f32.mxu0 0.0
        %1048 = vmatmul.mubr.f32.gmra.mrb[0].mxu0 %v846
        %v1049 = vpop.f32.mrb[0].mxu0
        %v1050 = vadd.f32 0.0, %v1049
        %v1051 = vpop.f32.mrb[0].mxu0
        %1052 = vmatprep.mubr.f32.mxu0 0.0
        %1053 = vmatmul.mubr.f32.gmra.mrb[0].mxu0 %v849
        %v1054 = vpop.f32.mrb[0].mxu0
        %v1055 = vadd.f32 0.0, %v1054
        %v1056 = vpop.f32.mrb[0].mxu0
        %1057 = vmatprep.mubr.f32.mxu0 0.0
        %1058 = vmatmul.mubr.f32.gmra.mrb[0].mxu0 %v852
        %v1059 = vpop.f32.mrb[0].mxu0
        %v1060 = vadd.f32 0.0, %v1059
        %v1061 = vpop.f32.mrb[0].mxu0
        %1062 = vmatprep.mubr.f32.mxu0 0.0
        %1063 = vmatmul.mubr.f32.gmra.mrb[0].mxu0 %v855
        %v1064 = vpop.f32.mrb[0].mxu0
        %v1065 = vadd.f32 0.0, %v1064
        %v1066 = vpop.f32.mrb[0].mxu0
        %1067 = vmatprep.mubr.f32.mxu0 0.0
        %1068 = vmatmul.mubr.f32.gmra.mrb[0].mxu0 %v858
        %v1069 = vpop.f32.mrb[0].mxu0
        %v1070 = vadd.f32 0.0, %v1069
        %v1071 = vpop.f32.mrb[0].mxu0
        %1072 = vmatprep.mubr.f32.mxu0 0.0
        %1073 = vmatmul.mubr.f32.gmra.mrb[0].mxu0 %v861
        %v1074 = vpop.f32.mrb[0].mxu0
        %v1075 = vadd.f32 0.0, %v1074
        %v1076 = vpop.f32.mrb[0].mxu0
        %1077 = vmatprep.mubr.f32.mxu0 0.0
        %1078 = vmatmul.mubr.f32.gmra.mrb[0].mxu0 %v864
        %v1079 = vpop.f32.mrb[0].mxu0
        %v1080 = vadd.f32 0.0, %v1079
        %v1081 = vpop.f32.mrb[0].mxu0
        %1082 = vmatprep.mubr.f32.mxu0 0.0
        %1083 = vmatmul.mubr.f32.gmra.mrb[0].mxu0 %v867
        %v1084 = vpop.f32.mrb[0].mxu0
        %v1085 = vadd.f32 0.0, %v1084
        %v1086 = vpop.f32.mrb[0].mxu0
        %1087 = vmatprep.mubr.f32.mxu0 0.0
        %1088 = vmatmul.mubr.f32.gmra.mrb[0].mxu0 %v870
        %v1089 = vpop.f32.mrb[0].mxu0
        %v1090 = vadd.f32 0.0, %v1089
        %v1091 = vpop.f32.mrb[0].mxu0
        %1092 = vmatprep.mubr.f32.mxu0 0.0
        %1093 = vmatmul.mubr.f32.gmra.mrb[0].mxu0 %v873
        %v1094 = vpop.f32.mrb[0].mxu0
        %v1095 = vadd.f32 0.0, %v1094
        %v1096 = vpop.f32.mrb[0].mxu0
        %1097 = vmatprep.mubr.f32.mxu0 0.0
        %1098 = vmatmul.mubr.f32.gmra.mrb[0].mxu0 %v876
        %v1099 = vpop.f32.mrb[0].mxu0
        %v1100 = vadd.f32 0.0, %v1099
        %v1101 = vpop.f32.mrb[0].mxu0
        %1102 = vdwg.mxu0
        %v1104 = vsel %vm781, %v585, 0
        %v1107 = vsel %vm781, %v586, 0
        %v1110 = vsel %vm781, %v587, 0
        %v1113 = vsel %vm781, %v588, 0
        %v1116 = vsel %vm781, %v589, 0
        %v1119 = vsel %vm781, %v590, 0
        %v1122 = vsel %vm781, %v591, 0
        %v1125 = vsel %vm781, %v592, 0
        %v1128 = vsel %vm781, %v593, 0
        %v1131 = vsel %vm781, %v594, 0
        %v1134 = vsel %vm781, %v595, 0
        %v1137 = vsel %vm781, %v596, 0
        %v1140 = vsel %vm781, %v597, 0
        %v1143 = vsel %vm781, %v598, 0
        %v1146 = vsel %vm781, %v599, 0
        %v1149 = vsel %vm781, %v600, 0
        %v1152 = vsel %vm781, %v601, 0
        %v1155 = vsel %vm781, %v602, 0
        %v1158 = vsel %vm781, %v603, 0
        %v1161 = vsel %vm781, %v604, 0
        %v1164 = vsel %vm781, %v605, 0
        %v1167 = vsel %vm781, %v606, 0
        %v1170 = vsel %vm781, %v607, 0
        %v1173 = vsel %vm781, %v608, 0
        %v1176 = vsel %vm781, %v609, 0
        %v1179 = vsel %vm781, %v610, 0
        %v1182 = vsel %vm781, %v611, 0
        %v1185 = vsel %vm781, %v612, 0
        %v1188 = vsel %vm781, %v613, 0
        %v1191 = vsel %vm781, %v614, 0
        %v1194 = vsel %vm781, %v615, 0
        %v1197 = vsel %vm781, %v616, 0
        %1199 = vmatprep.subr.mxu0 0.0
        %1200 = vmatpush1.msra.mxu0 %v617
        %1201 = vmatprep.subr.mxu0 0.0
        %1202 = vmatpush1.msra.mxu0 %v618
        %1203 = vmatprep.subr.mxu0 0.0
        %1204 = vmatpush1.msra.mxu0 0.0
        %1205 = vmatprep.subr.mxu0 0.0
        %1206 = vmatpush1.msra.mxu0 0.0
        %1207 = vmatprep.subr.mxu0 0.0
        %1208 = vmatpush1.msra.mxu0 0.0
        %1209 = vmatprep.subr.mxu0 0.0
        %1210 = vmatpush1.msra.mxu0 0.0
        %1211 = vmatprep.subr.mxu0 0.0
        %1212 = vmatpush1.msra.mxu0 0.0
        %1213 = vmatprep.subr.mxu0 0.0
        %1214 = vmatpush1.msra.mxu0 0.0
        %1215 = vmatprep.subr.mxu0 0.0
        %1216 = vmatpush1.msra.mxu0 0.0
        %1217 = vmatprep.subr.mxu0 0.0
        %1218 = vmatpush1.msra.mxu0 0.0
        %1219 = vmatprep.subr.mxu0 0.0
        %1220 = vmatpush1.msra.mxu0 0.0
        %1221 = vmatprep.subr.mxu0 0.0
        %1222 = vmatpush1.msra.mxu0 0.0
        %1223 = vmatprep.subr.mxu0 0.0
        %1224 = vmatpush1.msra.mxu0 0.0
        %1225 = vmatprep.subr.mxu0 0.0
        %1226 = vmatpush1.msra.mxu0 0.0
        %1227 = vmatprep.subr.mxu0 0.0
        %1228 = vmatpush1.msra.mxu0 0.0
        %1229 = vmatprep.subr.mxu0 0.0
        %1230 = vmatpush1.msra.mxu0 0.0
        %1231 = vmatprep.subr.mxu0 0.0
        %1232 = vmatpush1.msra.mxu0 0.0
        %1233 = vmatprep.subr.mxu0 0.0
        %1234 = vmatpush1.msra.mxu0 0.0
        %1235 = vmatprep.subr.mxu0 0.0
        %1236 = vmatpush1.msra.mxu0 0.0
        %1237 = vmatprep.subr.mxu0 0.0
        %1238 = vmatpush1.msra.mxu0 0.0
        %1239 = vmatprep.subr.mxu0 0.0
        %1240 = vmatpush1.msra.mxu0 0.0
        %1241 = vmatprep.subr.mxu0 0.0
        %1242 = vmatpush1.msra.mxu0 0.0
        %1243 = vmatprep.subr.mxu0 0.0
        %1244 = vmatpush1.msra.mxu0 0.0
        %1245 = vmatprep.subr.mxu0 0.0
        %1246 = vmatpush1.msra.mxu0 0.0
        %1247 = vmatprep.subr.mxu0 0.0
        %1248 = vmatpush1.msra.mxu0 0.0
        %1249 = vmatprep.subr.mxu0 0.0
        %1250 = vmatpush1.msra.mxu0 0.0
        %1251 = vmatprep.subr.mxu0 0.0
        %1252 = vmatpush1.msra.mxu0 0.0
        %1253 = vmatprep.subr.mxu0 0.0
        %1254 = vmatpush1.msra.mxu0 0.0
        %1255 = vmatprep.subr.mxu0 0.0
        %1256 = vmatpush1.msra.mxu0 0.0
        %1257 = vmatprep.subr.mxu0 0.0
        %1258 = vmatpush1.msra.mxu0 0.0
        %1259 = vmatprep.subr.mxu0 0.0
        %1260 = vmatpush1.msra.mxu0 0.0
        %1261 = vmatprep.subr.mxu0 0.0
        %1262 = vmatpush1.msra.mxu0 0.0
        %1263 = vmatprep.mubr.f32.mxu0 0.0
        %1264 = vmatmul.mubr.f32.gmra.mrb[0].mxu0 %v1104
        %v1265 = vpop.f32.mrb[0].mxu0
        %v1266 = vadd.f32 %v945, %v1265
        %v1267 = vpop.f32.mrb[0].mxu0
        %1268 = vmatprep.mubr.f32.mxu0 0.0
        %1269 = vmatmul.mubr.f32.gmra.mrb[0].mxu0 %v1107
        %v1270 = vpop.f32.mrb[0].mxu0
        %v1271 = vadd.f32 %v950, %v1270
        %v1272 = vpop.f32.mrb[0].mxu0
        %1273 = vmatprep.mubr.f32.mxu0 0.0
        %1274 = vmatmul.mubr.f32.gmra.mrb[0].mxu0 %v1110
        %v1275 = vpop.f32.mrb[0].mxu0
        %v1276 = vadd.f32 %v955, %v1275
        %v1277 = vpop.f32.mrb[0].mxu0
        %1278 = vmatprep.mubr.f32.mxu0 0.0
        %1279 = vmatmul.mubr.f32.gmra.mrb[0].mxu0 %v1113
        %v1280 = vpop.f32.mrb[0].mxu0
        %v1281 = vadd.f32 %v960, %v1280
        %v1282 = vpop.f32.mrb[0].mxu0
        %1283 = vmatprep.mubr.f32.mxu0 0.0
        %1284 = vmatmul.mubr.f32.gmra.mrb[0].mxu0 %v1116
        %v1285 = vpop.f32.mrb[0].mxu0
        %v1286 = vadd.f32 %v965, %v1285
        %v1287 = vpop.f32.mrb[0].mxu0
        %1288 = vmatprep.mubr.f32.mxu0 0.0
        %1289 = vmatmul.mubr.f32.gmra.mrb[0].mxu0 %v1119
        %v1290 = vpop.f32.mrb[0].mxu0
        %v1291 = vadd.f32 %v970, %v1290
        %v1292 = vpop.f32.mrb[0].mxu0
        %1293 = vmatprep.mubr.f32.mxu0 0.0
        %1294 = vmatmul.mubr.f32.gmra.mrb[0].mxu0 %v1122
        %v1295 = vpop.f32.mrb[0].mxu0
        %v1296 = vadd.f32 %v975, %v1295
        %v1297 = vpop.f32.mrb[0].mxu0
        %1298 = vmatprep.mubr.f32.mxu0 0.0
        %1299 = vmatmul.mubr.f32.gmra.mrb[0].mxu0 %v1125
        %v1300 = vpop.f32.mrb[0].mxu0
        %v1301 = vadd.f32 %v980, %v1300
        %v1302 = vpop.f32.mrb[0].mxu0
        %1303 = vmatprep.mubr.f32.mxu0 0.0
        %1304 = vmatmul.mubr.f32.gmra.mrb[0].mxu0 %v1128
        %v1305 = vpop.f32.mrb[0].mxu0
        %v1306 = vadd.f32 %v985, %v1305
        %v1307 = vpop.f32.mrb[0].mxu0
        %1308 = vmatprep.mubr.f32.mxu0 0.0
        %1309 = vmatmul.mubr.f32.gmra.mrb[0].mxu0 %v1131
        %v1310 = vpop.f32.mrb[0].mxu0
        %v1311 = vadd.f32 %v990, %v1310
        %v1312 = vpop.f32.mrb[0].mxu0
        %1313 = vmatprep.mubr.f32.mxu0 0.0
        %1314 = vmatmul.mubr.f32.gmra.mrb[0].mxu0 %v1134
        %v1315 = vpop.f32.mrb[0].mxu0
        %v1316 = vadd.f32 %v995, %v1315
        %v1317 = vpop.f32.mrb[0].mxu0
        %1318 = vmatprep.mubr.f32.mxu0 0.0
        %1319 = vmatmul.mubr.f32.gmra.mrb[0].mxu0 %v1137
        %v1320 = vpop.f32.mrb[0].mxu0
        %v1321 = vadd.f32 %v1000, %v1320
        %v1322 = vpop.f32.mrb[0].mxu0
        %1323 = vmatprep.mubr.f32.mxu0 0.0
        %1324 = vmatmul.mubr.f32.gmra.mrb[0].mxu0 %v1140
        %v1325 = vpop.f32.mrb[0].mxu0
        %v1326 = vadd.f32 %v1005, %v1325
        %v1327 = vpop.f32.mrb[0].mxu0
        %1328 = vmatprep.mubr.f32.mxu0 0.0
        %1329 = vmatmul.mubr.f32.gmra.mrb[0].mxu0 %v1143
        %v1330 = vpop.f32.mrb[0].mxu0
        %v1331 = vadd.f32 %v1010, %v1330
        %v1332 = vpop.f32.mrb[0].mxu0
        %1333 = vmatprep.mubr.f32.mxu0 0.0
        %1334 = vmatmul.mubr.f32.gmra.mrb[0].mxu0 %v1146
        %v1335 = vpop.f32.mrb[0].mxu0
        %v1336 = vadd.f32 %v1015, %v1335
        %v1337 = vpop.f32.mrb[0].mxu0
        %1338 = vmatprep.mubr.f32.mxu0 0.0
        %1339 = vmatmul.mubr.f32.gmra.mrb[0].mxu0 %v1149
        %v1340 = vpop.f32.mrb[0].mxu0
        %v1341 = vadd.f32 %v1020, %v1340
        %v1342 = vpop.f32.mrb[0].mxu0
        %1343 = vmatprep.mubr.f32.mxu0 0.0
        %1344 = vmatmul.mubr.f32.gmra.mrb[0].mxu0 %v1152
        %v1345 = vpop.f32.mrb[0].mxu0
        %v1346 = vadd.f32 %v1025, %v1345
        %v1347 = vpop.f32.mrb[0].mxu0
        %1348 = vmatprep.mubr.f32.mxu0 0.0
        %1349 = vmatmul.mubr.f32.gmra.mrb[0].mxu0 %v1155
        %v1350 = vpop.f32.mrb[0].mxu0
        %v1351 = vadd.f32 %v1030, %v1350
        %v1352 = vpop.f32.mrb[0].mxu0
        %1353 = vmatprep.mubr.f32.mxu0 0.0
        %1354 = vmatmul.mubr.f32.gmra.mrb[0].mxu0 %v1158
        %v1355 = vpop.f32.mrb[0].mxu0
        %v1356 = vadd.f32 %v1035, %v1355
        %v1357 = vpop.f32.mrb[0].mxu0
        %1358 = vmatprep.mubr.f32.mxu0 0.0
        %1359 = vmatmul.mubr.f32.gmra.mrb[0].mxu0 %v1161
        %v1360 = vpop.f32.mrb[0].mxu0
        %v1361 = vadd.f32 %v1040, %v1360
        %v1362 = vpop.f32.mrb[0].mxu0
        %1363 = vmatprep.mubr.f32.mxu0 0.0
        %1364 = vmatmul.mubr.f32.gmra.mrb[0].mxu0 %v1164
        %v1365 = vpop.f32.mrb[0].mxu0
        %v1366 = vadd.f32 %v1045, %v1365
        %v1367 = vpop.f32.mrb[0].mxu0
        %1368 = vmatprep.mubr.f32.mxu0 0.0
        %1369 = vmatmul.mubr.f32.gmra.mrb[0].mxu0 %v1167
        %v1370 = vpop.f32.mrb[0].mxu0
        %v1371 = vadd.f32 %v1050, %v1370
        %v1372 = vpop.f32.mrb[0].mxu0
        %1373 = vmatprep.mubr.f32.mxu0 0.0
        %1374 = vmatmul.mubr.f32.gmra.mrb[0].mxu0 %v1170
        %v1375 = vpop.f32.mrb[0].mxu0
        %v1376 = vadd.f32 %v1055, %v1375
        %v1377 = vpop.f32.mrb[0].mxu0
        %1378 = vmatprep.mubr.f32.mxu0 0.0
        %1379 = vmatmul.mubr.f32.gmra.mrb[0].mxu0 %v1173
        %v1380 = vpop.f32.mrb[0].mxu0
        %v1381 = vadd.f32 %v1060, %v1380
        %v1382 = vpop.f32.mrb[0].mxu0
        %1383 = vmatprep.mubr.f32.mxu0 0.0
        %1384 = vmatmul.mubr.f32.gmra.mrb[0].mxu0 %v1176
        %v1385 = vpop.f32.mrb[0].mxu0
        %v1386 = vadd.f32 %v1065, %v1385
        %v1387 = vpop.f32.mrb[0].mxu0
        %1388 = vmatprep.mubr.f32.mxu0 0.0
        %1389 = vmatmul.mubr.f32.gmra.mrb[0].mxu0 %v1179
        %v1390 = vpop.f32.mrb[0].mxu0
        %v1391 = vadd.f32 %v1070, %v1390
        %v1392 = vpop.f32.mrb[0].mxu0
        %1393 = vmatprep.mubr.f32.mxu0 0.0
        %1394 = vmatmul.mubr.f32.gmra.mrb[0].mxu0 %v1182
        %v1395 = vpop.f32.mrb[0].mxu0
        %v1396 = vadd.f32 %v1075, %v1395
        %v1397 = vpop.f32.mrb[0].mxu0
        %1398 = vmatprep.mubr.f32.mxu0 0.0
        %1399 = vmatmul.mubr.f32.gmra.mrb[0].mxu0 %v1185
        %v1400 = vpop.f32.mrb[0].mxu0
        %v1401 = vadd.f32 %v1080, %v1400
        %v1402 = vpop.f32.mrb[0].mxu0
        %1403 = vmatprep.mubr.f32.mxu0 0.0
        %1404 = vmatmul.mubr.f32.gmra.mrb[0].mxu0 %v1188
        %v1405 = vpop.f32.mrb[0].mxu0
        %v1406 = vadd.f32 %v1085, %v1405
        %v1407 = vpop.f32.mrb[0].mxu0
        %1408 = vmatprep.mubr.f32.mxu0 0.0
        %1409 = vmatmul.mubr.f32.gmra.mrb[0].mxu0 %v1191
        %v1410 = vpop.f32.mrb[0].mxu0
        %v1411 = vadd.f32 %v1090, %v1410
        %v1412 = vpop.f32.mrb[0].mxu0
        %1413 = vmatprep.mubr.f32.mxu0 0.0
        %1414 = vmatmul.mubr.f32.gmra.mrb[0].mxu0 %v1194
        %v1415 = vpop.f32.mrb[0].mxu0
        %v1416 = vadd.f32 %v1095, %v1415
        %v1417 = vpop.f32.mrb[0].mxu0
        %1418 = vmatprep.mubr.f32.mxu0 0.0
        %1419 = vmatmul.mubr.f32.gmra.mrb[0].mxu0 %v1197
        %v1420 = vpop.f32.mrb[0].mxu0
        %v1421 = vadd.f32 %v1100, %v1420
        %v1422 = vpop.f32.mrb[0].mxu0
        %1423 = vdwg.mxu0
        %1424 = vset.pattern.permute.xlu0 2
        %1425 = vperm.xlu0 %1424, %v393
        %v1426 = vpop.permute.xlu0 %1425
        %1428 = vset.pattern.permute.xlu0 2
        %1429 = vperm.xlu0 %1428, %v394
        %v1430 = vpop.permute.xlu0 %1429
        %1432 = vset.pattern.permute.xlu0 2
        %1433 = vperm.xlu0 %1432, %v395
        %v1434 = vpop.permute.xlu0 %1433
        %1436 = vset.pattern.permute.xlu0 2
        %1437 = vperm.xlu0 %1436, %v396
        %v1438 = vpop.permute.xlu0 %1437
        %1440 = vset.pattern.permute.xlu0 2
        %1441 = vperm.xlu0 %1440, %v397
        %v1442 = vpop.permute.xlu0 %1441
        %1444 = vset.pattern.permute.xlu0 2
        %1445 = vperm.xlu0 %1444, %v398
        %v1446 = vpop.permute.xlu0 %1445
        %1448 = vset.pattern.permute.xlu0 2
        %1449 = vperm.xlu0 %1448, %v399
        %v1450 = vpop.permute.xlu0 %1449
        %1452 = vset.pattern.permute.xlu0 2
        %1453 = vperm.xlu0 %1452, %v400
        %v1454 = vpop.permute.xlu0 %1453
        %1456 = vset.pattern.permute.xlu0 2
        %1457 = vperm.xlu0 %1456, %v401
        %v1458 = vpop.permute.xlu0 %1457
        %1460 = vset.pattern.permute.xlu0 2
        %1461 = vperm.xlu0 %1460, %v402
        %v1462 = vpop.permute.xlu0 %1461
        %1464 = vset.pattern.permute.xlu0 2
        %1465 = vperm.xlu0 %1464, %v403
        %v1466 = vpop.permute.xlu0 %1465
        %1468 = vset.pattern.permute.xlu0 2
        %1469 = vperm.xlu0 %1468, %v404
        %v1470 = vpop.permute.xlu0 %1469
        %1472 = vset.pattern.permute.xlu0 2
        %1473 = vperm.xlu0 %1472, %v405
        %v1474 = vpop.permute.xlu0 %1473
        %1476 = vset.pattern.permute.xlu0 2
        %1477 = vperm.xlu0 %1476, %v406
        %v1478 = vpop.permute.xlu0 %1477
        %1480 = vset.pattern.permute.xlu0 2
        %1481 = vperm.xlu0 %1480, %v407
        %v1482 = vpop.permute.xlu0 %1481
        %1484 = vset.pattern.permute.xlu0 2
        %1485 = vperm.xlu0 %1484, %v408
        %v1486 = vpop.permute.xlu0 %1485
        %1488 = vset.pattern.permute.xlu0 2
        %1489 = vperm.xlu0 %1488, %v409
        %v1490 = vpop.permute.xlu0 %1489
        %1492 = vset.pattern.permute.xlu0 2
        %1493 = vperm.xlu0 %1492, %v410
        %v1494 = vpop.permute.xlu0 %1493
        %1496 = vset.pattern.permute.xlu0 2
        %1497 = vperm.xlu0 %1496, %v411
        %v1498 = vpop.permute.xlu0 %1497
        %1500 = vset.pattern.permute.xlu0 2
        %1501 = vperm.xlu0 %1500, %v412
        %v1502 = vpop.permute.xlu0 %1501
        %1504 = vset.pattern.permute.xlu0 2
        %1505 = vperm.xlu0 %1504, %v413
        %v1506 = vpop.permute.xlu0 %1505
        %1508 = vset.pattern.permute.xlu0 2
        %1509 = vperm.xlu0 %1508, %v414
        %v1510 = vpop.permute.xlu0 %1509
        %1512 = vset.pattern.permute.xlu0 2
        %1513 = vperm.xlu0 %1512, %v415
        %v1514 = vpop.permute.xlu0 %1513
        %1516 = vset.pattern.permute.xlu0 2
        %1517 = vperm.xlu0 %1516, %v416
        %v1518 = vpop.permute.xlu0 %1517
        %1520 = vset.pattern.permute.xlu0 2
        %1521 = vperm.xlu0 %1520, %v417
        %v1522 = vpop.permute.xlu0 %1521
        %1524 = vset.pattern.permute.xlu0 2
        %1525 = vperm.xlu0 %1524, %v418
        %v1526 = vpop.permute.xlu0 %1525
        %1528 = vset.pattern.permute.xlu0 2
        %1529 = vperm.xlu0 %1528, %v419
        %v1530 = vpop.permute.xlu0 %1529
        %1532 = vset.pattern.permute.xlu0 2
        %1533 = vperm.xlu0 %1532, %v420
        %v1534 = vpop.permute.xlu0 %1533
        %1536 = vset.pattern.permute.xlu0 2
        %1537 = vperm.xlu0 %1536, %v421
        %v1538 = vpop.permute.xlu0 %1537
        %1540 = vset.pattern.permute.xlu0 2
        %1541 = vperm.xlu0 %1540, %v422
        %v1542 = vpop.permute.xlu0 %1541
        %1544 = vset.pattern.permute.xlu0 2
        %1545 = vperm.xlu0 %1544, %v423
        %v1546 = vpop.permute.xlu0 %1545
        %1548 = vset.pattern.permute.xlu0 2
        %1549 = vperm.xlu0 %1548, %v424
        %v1550 = vpop.permute.xlu0 %1549
        %v1552 = vmul.f32 %v1426, %v361
        %v1553 = vmul.f32 %v1430, %v362
        %v1554 = vmul.f32 %v1434, %v363
        %v1555 = vmul.f32 %v1438, %v364
        %v1556 = vmul.f32 %v1442, %v365
        %v1557 = vmul.f32 %v1446, %v366
        %v1558 = vmul.f32 %v1450, %v367
        %v1559 = vmul.f32 %v1454, %v368
        %v1560 = vmul.f32 %v1458, %v369
        %v1561 = vmul.f32 %v1462, %v370
        %v1562 = vmul.f32 %v1466, %v371
        %v1563 = vmul.f32 %v1470, %v372
        %v1564 = vmul.f32 %v1474, %v373
        %v1565 = vmul.f32 %v1478, %v374
        %v1566 = vmul.f32 %v1482, %v375
        %v1567 = vmul.f32 %v1486, %v376
        %v1568 = vmul.f32 %v1490, %v377
        %v1569 = vmul.f32 %v1494, %v378
        %v1570 = vmul.f32 %v1498, %v379
        %v1571 = vmul.f32 %v1502, %v380
        %v1572 = vmul.f32 %v1506, %v381
        %v1573 = vmul.f32 %v1510, %v382
        %v1574 = vmul.f32 %v1514, %v383
        %v1575 = vmul.f32 %v1518, %v384
        %v1576 = vmul.f32 %v1522, %v385
        %v1577 = vmul.f32 %v1526, %v386
        %v1578 = vmul.f32 %v1530, %v387
        %v1579 = vmul.f32 %v1534, %v388
        %v1580 = vmul.f32 %v1538, %v389
        %v1581 = vmul.f32 %v1542, %v390
        %v1582 = vmul.f32 %v1546, %v391
        %v1583 = vmul.f32 %v1550, %v392
        %v1584 = vld [vmem:[%s4 + $0x20] sm:$0xff]
        %v1585 = vld [vmem:[%s4 + $0x28] sm:$0xff]
        %v1587 = vsel %vm781, %v1552, 0
        %v1590 = vsel %vm781, %v1553, 0
        %v1593 = vsel %vm781, %v1554, 0
        %v1596 = vsel %vm781, %v1555, 0
        %v1599 = vsel %vm781, %v1556, 0
        %v1602 = vsel %vm781, %v1557, 0
        %v1605 = vsel %vm781, %v1558, 0
        %v1608 = vsel %vm781, %v1559, 0
        %v1611 = vsel %vm781, %v1560, 0
        %v1614 = vsel %vm781, %v1561, 0
        %v1617 = vsel %vm781, %v1562, 0
        %v1620 = vsel %vm781, %v1563, 0
        %v1623 = vsel %vm781, %v1564, 0
        %v1626 = vsel %vm781, %v1565, 0
        %v1629 = vsel %vm781, %v1566, 0
        %v1632 = vsel %vm781, %v1567, 0
        %v1635 = vsel %vm781, %v1568, 0
        %v1638 = vsel %vm781, %v1569, 0
        %v1641 = vsel %vm781, %v1570, 0
        %v1644 = vsel %vm781, %v1571, 0
        %v1647 = vsel %vm781, %v1572, 0
        %v1650 = vsel %vm781, %v1573, 0
        %v1653 = vsel %vm781, %v1574, 0
        %v1656 = vsel %vm781, %v1575, 0
        %v1659 = vsel %vm781, %v1576, 0
        %v1662 = vsel %vm781, %v1577, 0
        %v1665 = vsel %vm781, %v1578, 0
        %v1668 = vsel %vm781, %v1579, 0
        %v1671 = vsel %vm781, %v1580, 0
        %v1674 = vsel %vm781, %v1581, 0
        %v1677 = vsel %vm781, %v1582, 0
        %v1680 = vsel %vm781, %v1583, 0
        %1682 = vmatprep.subr.mxu0 0.0
        %1683 = vmatpush1.msra.mxu0 %v1584
        %1684 = vmatprep.subr.mxu0 0.0
        %1685 = vmatpush1.msra.mxu0 %v1585
        %1686 = vmatprep.subr.mxu0 0.0
        %1687 = vmatpush1.msra.mxu0 0.0
        %1688 = vmatprep.subr.mxu0 0.0
        %1689 = vmatpush1.msra.mxu0 0.0
        %1690 = vmatprep.subr.mxu0 0.0
        %1691 = vmatpush1.msra.mxu0 0.0
        %1692 = vmatprep.subr.mxu0 0.0
        %1693 = vmatpush1.msra.mxu0 0.0
        %1694 = vmatprep.subr.mxu0 0.0
        %1695 = vmatpush1.msra.mxu0 0.0
        %1696 = vmatprep.subr.mxu0 0.0
        %1697 = vmatpush1.msra.mxu0 0.0
        %1698 = vmatprep.subr.mxu0 0.0
        %1699 = vmatpush1.msra.mxu0 0.0
        %1700 = vmatprep.subr.mxu0 0.0
        %1701 = vmatpush1.msra.mxu0 0.0
        %1702 = vmatprep.subr.mxu0 0.0
        %1703 = vmatpush1.msra.mxu0 0.0
        %1704 = vmatprep.subr.mxu0 0.0
        %1705 = vmatpush1.msra.mxu0 0.0
        %1706 = vmatprep.subr.mxu0 0.0
        %1707 = vmatpush1.msra.mxu0 0.0
        %1708 = vmatprep.subr.mxu0 0.0
        %1709 = vmatpush1.msra.mxu0 0.0
        %1710 = vmatprep.subr.mxu0 0.0
        %1711 = vmatpush1.msra.mxu0 0.0
        %1712 = vmatprep.subr.mxu0 0.0
        %1713 = vmatpush1.msra.mxu0 0.0
        %1714 = vmatprep.subr.mxu0 0.0
        %1715 = vmatpush1.msra.mxu0 0.0
        %1716 = vmatprep.subr.mxu0 0.0
        %1717 = vmatpush1.msra.mxu0 0.0
        %1718 = vmatprep.subr.mxu0 0.0
        %1719 = vmatpush1.msra.mxu0 0.0
        %1720 = vmatprep.subr.mxu0 0.0
        %1721 = vmatpush1.msra.mxu0 0.0
        %1722 = vmatprep.subr.mxu0 0.0
        %1723 = vmatpush1.msra.mxu0 0.0
        %1724 = vmatprep.subr.mxu0 0.0
        %1725 = vmatpush1.msra.mxu0 0.0
        %1726 = vmatprep.subr.mxu0 0.0
        %1727 = vmatpush1.msra.mxu0 0.0
        %1728 = vmatprep.subr.mxu0 0.0
        %1729 = vmatpush1.msra.mxu0 0.0
        %1730 = vmatprep.subr.mxu0 0.0
        %1731 = vmatpush1.msra.mxu0 0.0
        %1732 = vmatprep.subr.mxu0 0.0
        %1733 = vmatpush1.msra.mxu0 0.0
        %1734 = vmatprep.subr.mxu0 0.0
        %1735 = vmatpush1.msra.mxu0 0.0
        %1736 = vmatprep.subr.mxu0 0.0
        %1737 = vmatpush1.msra.mxu0 0.0
        %1738 = vmatprep.subr.mxu0 0.0
        %1739 = vmatpush1.msra.mxu0 0.0
        %1740 = vmatprep.subr.mxu0 0.0
        %1741 = vmatpush1.msra.mxu0 0.0
        %1742 = vmatprep.subr.mxu0 0.0
        %1743 = vmatpush1.msra.mxu0 0.0
        %1744 = vmatprep.subr.mxu0 0.0
        %1745 = vmatpush1.msra.mxu0 0.0
        %1746 = vmatprep.mubr.f32.mxu0 0.0
        %1747 = vmatmul.mubr.f32.gmra.mrb[0].mxu0 %v1587
        %v1748 = vpop.f32.mrb[0].mxu0
        %v1749 = vadd.f32 0.0, %v1748
        %v1750 = vpop.f32.mrb[0].mxu0
        %1751 = vmatprep.mubr.f32.mxu0 0.0
        %1752 = vmatmul.mubr.f32.gmra.mrb[0].mxu0 %v1590
        %v1753 = vpop.f32.mrb[0].mxu0
        %v1754 = vadd.f32 0.0, %v1753
        %v1755 = vpop.f32.mrb[0].mxu0
        %1756 = vmatprep.mubr.f32.mxu0 0.0
        %1757 = vmatmul.mubr.f32.gmra.mrb[0].mxu0 %v1593
        %v1758 = vpop.f32.mrb[0].mxu0
        %v1759 = vadd.f32 0.0, %v1758
        %v1760 = vpop.f32.mrb[0].mxu0
        %1761 = vmatprep.mubr.f32.mxu0 0.0
        %1762 = vmatmul.mubr.f32.gmra.mrb[0].mxu0 %v1596
        %v1763 = vpop.f32.mrb[0].mxu0
        %v1764 = vadd.f32 0.0, %v1763
        %v1765 = vpop.f32.mrb[0].mxu0
        %1766 = vmatprep.mubr.f32.mxu0 0.0
        %1767 = vmatmul.mubr.f32.gmra.mrb[0].mxu0 %v1599
        %v1768 = vpop.f32.mrb[0].mxu0
        %v1769 = vadd.f32 0.0, %v1768
        %v1770 = vpop.f32.mrb[0].mxu0
        %1771 = vmatprep.mubr.f32.mxu0 0.0
        %1772 = vmatmul.mubr.f32.gmra.mrb[0].mxu0 %v1602
        %v1773 = vpop.f32.mrb[0].mxu0
        %v1774 = vadd.f32 0.0, %v1773
        %v1775 = vpop.f32.mrb[0].mxu0
        %1776 = vmatprep.mubr.f32.mxu0 0.0
        %1777 = vmatmul.mubr.f32.gmra.mrb[0].mxu0 %v1605
        %v1778 = vpop.f32.mrb[0].mxu0
        %v1779 = vadd.f32 0.0, %v1778
        %v1780 = vpop.f32.mrb[0].mxu0
        %1781 = vmatprep.mubr.f32.mxu0 0.0
        %1782 = vmatmul.mubr.f32.gmra.mrb[0].mxu0 %v1608
        %v1783 = vpop.f32.mrb[0].mxu0
        %v1784 = vadd.f32 0.0, %v1783
        %v1785 = vpop.f32.mrb[0].mxu0
        %1786 = vmatprep.mubr.f32.mxu0 0.0
        %1787 = vmatmul.mubr.f32.gmra.mrb[0].mxu0 %v1611
        %v1788 = vpop.f32.mrb[0].mxu0
        %v1789 = vadd.f32 0.0, %v1788
        %v1790 = vpop.f32.mrb[0].mxu0
        %1791 = vmatprep.mubr.f32.mxu0 0.0
        %1792 = vmatmul.mubr.f32.gmra.mrb[0].mxu0 %v1614
        %v1793 = vpop.f32.mrb[0].mxu0
        %v1794 = vadd.f32 0.0, %v1793
        %v1795 = vpop.f32.mrb[0].mxu0
        %1796 = vmatprep.mubr.f32.mxu0 0.0
        %1797 = vmatmul.mubr.f32.gmra.mrb[0].mxu0 %v1617
        %v1798 = vpop.f32.mrb[0].mxu0
        %v1799 = vadd.f32 0.0, %v1798
        %v1800 = vpop.f32.mrb[0].mxu0
        %1801 = vmatprep.mubr.f32.mxu0 0.0
        %1802 = vmatmul.mubr.f32.gmra.mrb[0].mxu0 %v1620
        %v1803 = vpop.f32.mrb[0].mxu0
        %v1804 = vadd.f32 0.0, %v1803
        %v1805 = vpop.f32.mrb[0].mxu0
        %1806 = vmatprep.mubr.f32.mxu0 0.0
        %1807 = vmatmul.mubr.f32.gmra.mrb[0].mxu0 %v1623
        %v1808 = vpop.f32.mrb[0].mxu0
        %v1809 = vadd.f32 0.0, %v1808
        %v1810 = vpop.f32.mrb[0].mxu0
        %1811 = vmatprep.mubr.f32.mxu0 0.0
        %1812 = vmatmul.mubr.f32.gmra.mrb[0].mxu0 %v1626
        %v1813 = vpop.f32.mrb[0].mxu0
        %v1814 = vadd.f32 0.0, %v1813
        %v1815 = vpop.f32.mrb[0].mxu0
        %1816 = vmatprep.mubr.f32.mxu0 0.0
        %1817 = vmatmul.mubr.f32.gmra.mrb[0].mxu0 %v1629
        %v1818 = vpop.f32.mrb[0].mxu0
        %v1819 = vadd.f32 0.0, %v1818
        %v1820 = vpop.f32.mrb[0].mxu0
        %1821 = vmatprep.mubr.f32.mxu0 0.0
        %1822 = vmatmul.mubr.f32.gmra.mrb[0].mxu0 %v1632
        %v1823 = vpop.f32.mrb[0].mxu0
        %v1824 = vadd.f32 0.0, %v1823
        %v1825 = vpop.f32.mrb[0].mxu0
        %1826 = vmatprep.mubr.f32.mxu0 0.0
        %1827 = vmatmul.mubr.f32.gmra.mrb[0].mxu0 %v1635
        %v1828 = vpop.f32.mrb[0].mxu0
        %v1829 = vadd.f32 0.0, %v1828
        %v1830 = vpop.f32.mrb[0].mxu0
        %1831 = vmatprep.mubr.f32.mxu0 0.0
        %1832 = vmatmul.mubr.f32.gmra.mrb[0].mxu0 %v1638
        %v1833 = vpop.f32.mrb[0].mxu0
        %v1834 = vadd.f32 0.0, %v1833
        %v1835 = vpop.f32.mrb[0].mxu0
        %1836 = vmatprep.mubr.f32.mxu0 0.0
        %1837 = vmatmul.mubr.f32.gmra.mrb[0].mxu0 %v1641
        %v1838 = vpop.f32.mrb[0].mxu0
        %v1839 = vadd.f32 0.0, %v1838
        %v1840 = vpop.f32.mrb[0].mxu0
        %1841 = vmatprep.mubr.f32.mxu0 0.0
        %1842 = vmatmul.mubr.f32.gmra.mrb[0].mxu0 %v1644
        %v1843 = vpop.f32.mrb[0].mxu0
        %v1844 = vadd.f32 0.0, %v1843
        %v1845 = vpop.f32.mrb[0].mxu0
        %1846 = vmatprep.mubr.f32.mxu0 0.0
        %1847 = vmatmul.mubr.f32.gmra.mrb[0].mxu0 %v1647
        %v1848 = vpop.f32.mrb[0].mxu0
        %v1849 = vadd.f32 0.0, %v1848
        %v1850 = vpop.f32.mrb[0].mxu0
        %1851 = vmatprep.mubr.f32.mxu0 0.0
        %1852 = vmatmul.mubr.f32.gmra.mrb[0].mxu0 %v1650
        %v1853 = vpop.f32.mrb[0].mxu0
        %v1854 = vadd.f32 0.0, %v1853
        %v1855 = vpop.f32.mrb[0].mxu0
        %1856 = vmatprep.mubr.f32.mxu0 0.0
        %1857 = vmatmul.mubr.f32.gmra.mrb[0].mxu0 %v1653
        %v1858 = vpop.f32.mrb[0].mxu0
        %v1859 = vadd.f32 0.0, %v1858
        %v1860 = vpop.f32.mrb[0].mxu0
        %1861 = vmatprep.mubr.f32.mxu0 0.0
        %1862 = vmatmul.mubr.f32.gmra.mrb[0].mxu0 %v1656
        %v1863 = vpop.f32.mrb[0].mxu0
        %v1864 = vadd.f32 0.0, %v1863
        %v1865 = vpop.f32.mrb[0].mxu0
        %1866 = vmatprep.mubr.f32.mxu0 0.0
        %1867 = vmatmul.mubr.f32.gmra.mrb[0].mxu0 %v1659
        %v1868 = vpop.f32.mrb[0].mxu0
        %v1869 = vadd.f32 0.0, %v1868
        %v1870 = vpop.f32.mrb[0].mxu0
        %1871 = vmatprep.mubr.f32.mxu0 0.0
        %1872 = vmatmul.mubr.f32.gmra.mrb[0].mxu0 %v1662
        %v1873 = vpop.f32.mrb[0].mxu0
        %v1874 = vadd.f32 0.0, %v1873
        %v1875 = vpop.f32.mrb[0].mxu0
        %1876 = vmatprep.mubr.f32.mxu0 0.0
        %1877 = vmatmul.mubr.f32.gmra.mrb[0].mxu0 %v1665
        %v1878 = vpop.f32.mrb[0].mxu0
        %v1879 = vadd.f32 0.0, %v1878
        %v1880 = vpop.f32.mrb[0].mxu0
        %1881 = vmatprep.mubr.f32.mxu0 0.0
        %1882 = vmatmul.mubr.f32.gmra.mrb[0].mxu0 %v1668
        %v1883 = vpop.f32.mrb[0].mxu0
        %v1884 = vadd.f32 0.0, %v1883
        %v1885 = vpop.f32.mrb[0].mxu0
        %1886 = vmatprep.mubr.f32.mxu0 0.0
        %1887 = vmatmul.mubr.f32.gmra.mrb[0].mxu0 %v1671
        %v1888 = vpop.f32.mrb[0].mxu0
        %v1889 = vadd.f32 0.0, %v1888
        %v1890 = vpop.f32.mrb[0].mxu0
        %1891 = vmatprep.mubr.f32.mxu0 0.0
        %1892 = vmatmul.mubr.f32.gmra.mrb[0].mxu0 %v1674
        %v1893 = vpop.f32.mrb[0].mxu0
        %v1894 = vadd.f32 0.0, %v1893
        %v1895 = vpop.f32.mrb[0].mxu0
        %1896 = vmatprep.mubr.f32.mxu0 0.0
        %1897 = vmatmul.mubr.f32.gmra.mrb[0].mxu0 %v1677
        %v1898 = vpop.f32.mrb[0].mxu0
        %v1899 = vadd.f32 0.0, %v1898
        %v1900 = vpop.f32.mrb[0].mxu0
        %1901 = vmatprep.mubr.f32.mxu0 0.0
        %1902 = vmatmul.mubr.f32.gmra.mrb[0].mxu0 %v1680
        %v1903 = vpop.f32.mrb[0].mxu0
        %v1904 = vadd.f32 0.0, %v1903
        %v1905 = vpop.f32.mrb[0].mxu0
        %1906 = vdwg.mxu0
        %v1907 = vadd.f32 %v1266, %v1749
        %v1908 = vadd.f32 %v1271, %v1754
        %v1909 = vadd.f32 %v1276, %v1759
        %v1910 = vadd.f32 %v1281, %v1764
        %v1911 = vadd.f32 %v1286, %v1769
        %v1912 = vadd.f32 %v1291, %v1774
        %v1913 = vadd.f32 %v1296, %v1779
        %v1914 = vadd.f32 %v1301, %v1784
        %v1915 = vadd.f32 %v1306, %v1789
        %v1916 = vadd.f32 %v1311, %v1794
        %v1917 = vadd.f32 %v1316, %v1799
        %v1918 = vadd.f32 %v1321, %v1804
        %v1919 = vadd.f32 %v1326, %v1809
        %v1920 = vadd.f32 %v1331, %v1814
        %v1921 = vadd.f32 %v1336, %v1819
        %v1922 = vadd.f32 %v1341, %v1824
        %v1923 = vadd.f32 %v1346, %v1829
        %v1924 = vadd.f32 %v1351, %v1834
        %v1925 = vadd.f32 %v1356, %v1839
        %v1926 = vadd.f32 %v1361, %v1844
        %v1927 = vadd.f32 %v1366, %v1849
        %v1928 = vadd.f32 %v1371, %v1854
        %v1929 = vadd.f32 %v1376, %v1859
        %v1930 = vadd.f32 %v1381, %v1864
        %v1931 = vadd.f32 %v1386, %v1869
        %v1932 = vadd.f32 %v1391, %v1874
        %v1933 = vadd.f32 %v1396, %v1879
        %v1934 = vadd.f32 %v1401, %v1884
        %v1935 = vadd.f32 %v1406, %v1889
        %v1936 = vadd.f32 %v1411, %v1894
        %v1937 = vadd.f32 %v1416, %v1899
        %v1938 = vadd.f32 %v1421, %v1904
        %1939 = vset.pattern.permute.xlu0 3
        %1940 = vperm.xlu0 %1939, %v393
        %v1941 = vpop.permute.xlu0 %1940
        %1943 = vset.pattern.permute.xlu0 3
        %1944 = vperm.xlu0 %1943, %v394
        %v1945 = vpop.permute.xlu0 %1944
        %1947 = vset.pattern.permute.xlu0 3
        %1948 = vperm.xlu0 %1947, %v395
        %v1949 = vpop.permute.xlu0 %1948
        %1951 = vset.pattern.permute.xlu0 3
        %1952 = vperm.xlu0 %1951, %v396
        %v1953 = vpop.permute.xlu0 %1952
        %1955 = vset.pattern.permute.xlu0 3
        %1956 = vperm.xlu0 %1955, %v397
        %v1957 = vpop.permute.xlu0 %1956
        %1959 = vset.pattern.permute.xlu0 3
        %1960 = vperm.xlu0 %1959, %v398
        %v1961 = vpop.permute.xlu0 %1960
        %1963 = vset.pattern.permute.xlu0 3
        %1964 = vperm.xlu0 %1963, %v399
        %v1965 = vpop.permute.xlu0 %1964
        %1967 = vset.pattern.permute.xlu0 3
        %1968 = vperm.xlu0 %1967, %v400
        %v1969 = vpop.permute.xlu0 %1968
        %1971 = vset.pattern.permute.xlu0 3
        %1972 = vperm.xlu0 %1971, %v401
        %v1973 = vpop.permute.xlu0 %1972
        %1975 = vset.pattern.permute.xlu0 3
        %1976 = vperm.xlu0 %1975, %v402
        %v1977 = vpop.permute.xlu0 %1976
        %1979 = vset.pattern.permute.xlu0 3
        %1980 = vperm.xlu0 %1979, %v403
        %v1981 = vpop.permute.xlu0 %1980
        %1983 = vset.pattern.permute.xlu0 3
        %1984 = vperm.xlu0 %1983, %v404
        %v1985 = vpop.permute.xlu0 %1984
        %1987 = vset.pattern.permute.xlu0 3
        %1988 = vperm.xlu0 %1987, %v405
        %v1989 = vpop.permute.xlu0 %1988
        %1991 = vset.pattern.permute.xlu0 3
        %1992 = vperm.xlu0 %1991, %v406
        %v1993 = vpop.permute.xlu0 %1992
        %1995 = vset.pattern.permute.xlu0 3
        %1996 = vperm.xlu0 %1995, %v407
        %v1997 = vpop.permute.xlu0 %1996
        %1999 = vset.pattern.permute.xlu0 3
        %2000 = vperm.xlu0 %1999, %v408
        %v2001 = vpop.permute.xlu0 %2000
        %2003 = vset.pattern.permute.xlu0 3
        %2004 = vperm.xlu0 %2003, %v409
        %v2005 = vpop.permute.xlu0 %2004
        %2007 = vset.pattern.permute.xlu0 3
        %2008 = vperm.xlu0 %2007, %v410
        %v2009 = vpop.permute.xlu0 %2008
        %2011 = vset.pattern.permute.xlu0 3
        %2012 = vperm.xlu0 %2011, %v411
        %v2013 = vpop.permute.xlu0 %2012
        %2015 = vset.pattern.permute.xlu0 3
        %2016 = vperm.xlu0 %2015, %v412
        %v2017 = vpop.permute.xlu0 %2016
        %2019 = vset.pattern.permute.xlu0 3
        %2020 = vperm.xlu0 %2019, %v413
        %v2021 = vpop.permute.xlu0 %2020
        %2023 = vset.pattern.permute.xlu0 3
        %2024 = vperm.xlu0 %2023, %v414
        %v2025 = vpop.permute.xlu0 %2024
        %2027 = vset.pattern.permute.xlu0 3
        %2028 = vperm.xlu0 %2027, %v415
        %v2029 = vpop.permute.xlu0 %2028
        %2031 = vset.pattern.permute.xlu0 3
        %2032 = vperm.xlu0 %2031, %v416
        %v2033 = vpop.permute.xlu0 %2032
        %2035 = vset.pattern.permute.xlu0 3
        %2036 = vperm.xlu0 %2035, %v417
        %v2037 = vpop.permute.xlu0 %2036
        %2039 = vset.pattern.permute.xlu0 3
        %2040 = vperm.xlu0 %2039, %v418
        %v2041 = vpop.permute.xlu0 %2040
        %2043 = vset.pattern.permute.xlu0 3
        %2044 = vperm.xlu0 %2043, %v419
        %v2045 = vpop.permute.xlu0 %2044
        %2047 = vset.pattern.permute.xlu0 3
        %2048 = vperm.xlu0 %2047, %v420
        %v2049 = vpop.permute.xlu0 %2048
        %2051 = vset.pattern.permute.xlu0 3
        %2052 = vperm.xlu0 %2051, %v421
        %v2053 = vpop.permute.xlu0 %2052
        %2055 = vset.pattern.permute.xlu0 3
        %2056 = vperm.xlu0 %2055, %v422
        %v2057 = vpop.permute.xlu0 %2056
        %2059 = vset.pattern.permute.xlu0 3
        %2060 = vperm.xlu0 %2059, %v423
        %v2061 = vpop.permute.xlu0 %2060
        %2063 = vset.pattern.permute.xlu0 3
        %2064 = vperm.xlu0 %2063, %v424
        %v2065 = vpop.permute.xlu0 %2064
        %v2067 = vmul.f32 %v1941, %v361
        %v2068 = vmul.f32 %v1945, %v362
        %v2069 = vmul.f32 %v1949, %v363
        %v2070 = vmul.f32 %v1953, %v364
        %v2071 = vmul.f32 %v1957, %v365
        %v2072 = vmul.f32 %v1961, %v366
        %v2073 = vmul.f32 %v1965, %v367
        %v2074 = vmul.f32 %v1969, %v368
        %v2075 = vmul.f32 %v1973, %v369
        %v2076 = vmul.f32 %v1977, %v370
        %v2077 = vmul.f32 %v1981, %v371
        %v2078 = vmul.f32 %v1985, %v372
        %v2079 = vmul.f32 %v1989, %v373
        %v2080 = vmul.f32 %v1993, %v374
        %v2081 = vmul.f32 %v1997, %v375
        %v2082 = vmul.f32 %v2001, %v376
        %v2083 = vmul.f32 %v2005, %v377
        %v2084 = vmul.f32 %v2009, %v378
        %v2085 = vmul.f32 %v2013, %v379
        %v2086 = vmul.f32 %v2017, %v380
        %v2087 = vmul.f32 %v2021, %v381
        %v2088 = vmul.f32 %v2025, %v382
        %v2089 = vmul.f32 %v2029, %v383
        %v2090 = vmul.f32 %v2033, %v384
        %v2091 = vmul.f32 %v2037, %v385
        %v2092 = vmul.f32 %v2041, %v386
        %v2093 = vmul.f32 %v2045, %v387
        %v2094 = vmul.f32 %v2049, %v388
        %v2095 = vmul.f32 %v2053, %v389
        %v2096 = vmul.f32 %v2057, %v390
        %v2097 = vmul.f32 %v2061, %v391
        %v2098 = vmul.f32 %v2065, %v392
        %v2099 = vld [vmem:[%s4 + $0x30] sm:$0xff]
        %v2100 = vld [vmem:[%s4 + $0x38] sm:$0xff]
        %v2102 = vsel %vm781, %v2067, 0
        %v2105 = vsel %vm781, %v2068, 0
        %v2108 = vsel %vm781, %v2069, 0
        %v2111 = vsel %vm781, %v2070, 0
        %v2114 = vsel %vm781, %v2071, 0
        %v2117 = vsel %vm781, %v2072, 0
        %v2120 = vsel %vm781, %v2073, 0
        %v2123 = vsel %vm781, %v2074, 0
        %v2126 = vsel %vm781, %v2075, 0
        %v2129 = vsel %vm781, %v2076, 0
        %v2132 = vsel %vm781, %v2077, 0
        %v2135 = vsel %vm781, %v2078, 0
        %v2138 = vsel %vm781, %v2079, 0
        %v2141 = vsel %vm781, %v2080, 0
        %v2144 = vsel %vm781, %v2081, 0
        %v2147 = vsel %vm781, %v2082, 0
        %v2150 = vsel %vm781, %v2083, 0
        %v2153 = vsel %vm781, %v2084, 0
        %v2156 = vsel %vm781, %v2085, 0
        %v2159 = vsel %vm781, %v2086, 0
        %v2162 = vsel %vm781, %v2087, 0
        %v2165 = vsel %vm781, %v2088, 0
        %v2168 = vsel %vm781, %v2089, 0
        %v2171 = vsel %vm781, %v2090, 0
        %v2174 = vsel %vm781, %v2091, 0
        %v2177 = vsel %vm781, %v2092, 0
        %v2180 = vsel %vm781, %v2093, 0
        %v2183 = vsel %vm781, %v2094, 0
        %v2186 = vsel %vm781, %v2095, 0
        %v2189 = vsel %vm781, %v2096, 0
        %v2192 = vsel %vm781, %v2097, 0
        %v2195 = vsel %vm781, %v2098, 0
        %2197 = vmatprep.subr.mxu0 0.0
        %2198 = vmatpush1.msra.mxu0 %v2099
        %2199 = vmatprep.subr.mxu0 0.0
        %2200 = vmatpush1.msra.mxu0 %v2100
        %2201 = vmatprep.subr.mxu0 0.0
        %2202 = vmatpush1.msra.mxu0 0.0
        %2203 = vmatprep.subr.mxu0 0.0
        %2204 = vmatpush1.msra.mxu0 0.0
        %2205 = vmatprep.subr.mxu0 0.0
        %2206 = vmatpush1.msra.mxu0 0.0
        %2207 = vmatprep.subr.mxu0 0.0
        %2208 = vmatpush1.msra.mxu0 0.0
        %2209 = vmatprep.subr.mxu0 0.0
        %2210 = vmatpush1.msra.mxu0 0.0
        %2211 = vmatprep.subr.mxu0 0.0
        %2212 = vmatpush1.msra.mxu0 0.0
        %2213 = vmatprep.subr.mxu0 0.0
        %2214 = vmatpush1.msra.mxu0 0.0
        %2215 = vmatprep.subr.mxu0 0.0
        %2216 = vmatpush1.msra.mxu0 0.0
        %2217 = vmatprep.subr.mxu0 0.0
        %2218 = vmatpush1.msra.mxu0 0.0
        %2219 = vmatprep.subr.mxu0 0.0
        %2220 = vmatpush1.msra.mxu0 0.0
        %2221 = vmatprep.subr.mxu0 0.0
        %2222 = vmatpush1.msra.mxu0 0.0
        %2223 = vmatprep.subr.mxu0 0.0
        %2224 = vmatpush1.msra.mxu0 0.0
        %2225 = vmatprep.subr.mxu0 0.0
        %2226 = vmatpush1.msra.mxu0 0.0
        %2227 = vmatprep.subr.mxu0 0.0
        %2228 = vmatpush1.msra.mxu0 0.0
        %2229 = vmatprep.subr.mxu0 0.0
        %2230 = vmatpush1.msra.mxu0 0.0
        %2231 = vmatprep.subr.mxu0 0.0
        %2232 = vmatpush1.msra.mxu0 0.0
        %2233 = vmatprep.subr.mxu0 0.0
        %2234 = vmatpush1.msra.mxu0 0.0
        %2235 = vmatprep.subr.mxu0 0.0
        %2236 = vmatpush1.msra.mxu0 0.0
        %2237 = vmatprep.subr.mxu0 0.0
        %2238 = vmatpush1.msra.mxu0 0.0
        %2239 = vmatprep.subr.mxu0 0.0
        %2240 = vmatpush1.msra.mxu0 0.0
        %2241 = vmatprep.subr.mxu0 0.0
        %2242 = vmatpush1.msra.mxu0 0.0
        %2243 = vmatprep.subr.mxu0 0.0
        %2244 = vmatpush1.msra.mxu0 0.0
        %2245 = vmatprep.subr.mxu0 0.0
        %2246 = vmatpush1.msra.mxu0 0.0
        %2247 = vmatprep.subr.mxu0 0.0
        %2248 = vmatpush1.msra.mxu0 0.0
        %2249 = vmatprep.subr.mxu0 0.0
        %2250 = vmatpush1.msra.mxu0 0.0
        %2251 = vmatprep.subr.mxu0 0.0
        %2252 = vmatpush1.msra.mxu0 0.0
        %2253 = vmatprep.subr.mxu0 0.0
        %2254 = vmatpush1.msra.mxu0 0.0
        %2255 = vmatprep.subr.mxu0 0.0
        %2256 = vmatpush1.msra.mxu0 0.0
        %2257 = vmatprep.subr.mxu0 0.0
        %2258 = vmatpush1.msra.mxu0 0.0
        %2259 = vmatprep.subr.mxu0 0.0
        %2260 = vmatpush1.msra.mxu0 0.0
        %2261 = vmatprep.mubr.f32.mxu0 0.0
        %2262 = vmatmul.mubr.f32.gmra.mrb[0].mxu0 %v2102
        %v2263 = vpop.f32.mrb[0].mxu0
        %v2264 = vadd.f32 0.0, %v2263
        %v2265 = vpop.f32.mrb[0].mxu0
        %2266 = vmatprep.mubr.f32.mxu0 0.0
        %2267 = vmatmul.mubr.f32.gmra.mrb[0].mxu0 %v2105
        %v2268 = vpop.f32.mrb[0].mxu0
        %v2269 = vadd.f32 0.0, %v2268
        %v2270 = vpop.f32.mrb[0].mxu0
        %2271 = vmatprep.mubr.f32.mxu0 0.0
        %2272 = vmatmul.mubr.f32.gmra.mrb[0].mxu0 %v2108
        %v2273 = vpop.f32.mrb[0].mxu0
        %v2274 = vadd.f32 0.0, %v2273
        %v2275 = vpop.f32.mrb[0].mxu0
        %2276 = vmatprep.mubr.f32.mxu0 0.0
        %2277 = vmatmul.mubr.f32.gmra.mrb[0].mxu0 %v2111
        %v2278 = vpop.f32.mrb[0].mxu0
        %v2279 = vadd.f32 0.0, %v2278
        %v2280 = vpop.f32.mrb[0].mxu0
        %2281 = vmatprep.mubr.f32.mxu0 0.0
        %2282 = vmatmul.mubr.f32.gmra.mrb[0].mxu0 %v2114
        %v2283 = vpop.f32.mrb[0].mxu0
        %v2284 = vadd.f32 0.0, %v2283
        %v2285 = vpop.f32.mrb[0].mxu0
        %2286 = vmatprep.mubr.f32.mxu0 0.0
        %2287 = vmatmul.mubr.f32.gmra.mrb[0].mxu0 %v2117
        %v2288 = vpop.f32.mrb[0].mxu0
        %v2289 = vadd.f32 0.0, %v2288
        %v2290 = vpop.f32.mrb[0].mxu0
        %2291 = vmatprep.mubr.f32.mxu0 0.0
        %2292 = vmatmul.mubr.f32.gmra.mrb[0].mxu0 %v2120
        %v2293 = vpop.f32.mrb[0].mxu0
        %v2294 = vadd.f32 0.0, %v2293
        %v2295 = vpop.f32.mrb[0].mxu0
        %2296 = vmatprep.mubr.f32.mxu0 0.0
        %2297 = vmatmul.mubr.f32.gmra.mrb[0].mxu0 %v2123
        %v2298 = vpop.f32.mrb[0].mxu0
        %v2299 = vadd.f32 0.0, %v2298
        %v2300 = vpop.f32.mrb[0].mxu0
        %2301 = vmatprep.mubr.f32.mxu0 0.0
        %2302 = vmatmul.mubr.f32.gmra.mrb[0].mxu0 %v2126
        %v2303 = vpop.f32.mrb[0].mxu0
        %v2304 = vadd.f32 0.0, %v2303
        %v2305 = vpop.f32.mrb[0].mxu0
        %2306 = vmatprep.mubr.f32.mxu0 0.0
        %2307 = vmatmul.mubr.f32.gmra.mrb[0].mxu0 %v2129
        %v2308 = vpop.f32.mrb[0].mxu0
        %v2309 = vadd.f32 0.0, %v2308
        %v2310 = vpop.f32.mrb[0].mxu0
        %2311 = vmatprep.mubr.f32.mxu0 0.0
        %2312 = vmatmul.mubr.f32.gmra.mrb[0].mxu0 %v2132
        %v2313 = vpop.f32.mrb[0].mxu0
        %v2314 = vadd.f32 0.0, %v2313
        %v2315 = vpop.f32.mrb[0].mxu0
        %2316 = vmatprep.mubr.f32.mxu0 0.0
        %2317 = vmatmul.mubr.f32.gmra.mrb[0].mxu0 %v2135
        %v2318 = vpop.f32.mrb[0].mxu0
        %v2319 = vadd.f32 0.0, %v2318
        %v2320 = vpop.f32.mrb[0].mxu0
        %2321 = vmatprep.mubr.f32.mxu0 0.0
        %2322 = vmatmul.mubr.f32.gmra.mrb[0].mxu0 %v2138
        %v2323 = vpop.f32.mrb[0].mxu0
        %v2324 = vadd.f32 0.0, %v2323
        %v2325 = vpop.f32.mrb[0].mxu0
        %2326 = vmatprep.mubr.f32.mxu0 0.0
        %2327 = vmatmul.mubr.f32.gmra.mrb[0].mxu0 %v2141
        %v2328 = vpop.f32.mrb[0].mxu0
        %v2329 = vadd.f32 0.0, %v2328
        %v2330 = vpop.f32.mrb[0].mxu0
        %2331 = vmatprep.mubr.f32.mxu0 0.0
        %2332 = vmatmul.mubr.f32.gmra.mrb[0].mxu0 %v2144
        %v2333 = vpop.f32.mrb[0].mxu0
        %v2334 = vadd.f32 0.0, %v2333
        %v2335 = vpop.f32.mrb[0].mxu0
        %2336 = vmatprep.mubr.f32.mxu0 0.0
        %2337 = vmatmul.mubr.f32.gmra.mrb[0].mxu0 %v2147
        %v2338 = vpop.f32.mrb[0].mxu0
        %v2339 = vadd.f32 0.0, %v2338
        %v2340 = vpop.f32.mrb[0].mxu0
        %2341 = vmatprep.mubr.f32.mxu0 0.0
        %2342 = vmatmul.mubr.f32.gmra.mrb[0].mxu0 %v2150
        %v2343 = vpop.f32.mrb[0].mxu0
        %v2344 = vadd.f32 0.0, %v2343
        %v2345 = vpop.f32.mrb[0].mxu0
        %2346 = vmatprep.mubr.f32.mxu0 0.0
        %2347 = vmatmul.mubr.f32.gmra.mrb[0].mxu0 %v2153
        %v2348 = vpop.f32.mrb[0].mxu0
        %v2349 = vadd.f32 0.0, %v2348
        %v2350 = vpop.f32.mrb[0].mxu0
        %2351 = vmatprep.mubr.f32.mxu0 0.0
        %2352 = vmatmul.mubr.f32.gmra.mrb[0].mxu0 %v2156
        %v2353 = vpop.f32.mrb[0].mxu0
        %v2354 = vadd.f32 0.0, %v2353
        %v2355 = vpop.f32.mrb[0].mxu0
        %2356 = vmatprep.mubr.f32.mxu0 0.0
        %2357 = vmatmul.mubr.f32.gmra.mrb[0].mxu0 %v2159
        %v2358 = vpop.f32.mrb[0].mxu0
        %v2359 = vadd.f32 0.0, %v2358
        %v2360 = vpop.f32.mrb[0].mxu0
        %2361 = vmatprep.mubr.f32.mxu0 0.0
        %2362 = vmatmul.mubr.f32.gmra.mrb[0].mxu0 %v2162
        %v2363 = vpop.f32.mrb[0].mxu0
        %v2364 = vadd.f32 0.0, %v2363
        %v2365 = vpop.f32.mrb[0].mxu0
        %2366 = vmatprep.mubr.f32.mxu0 0.0
        %2367 = vmatmul.mubr.f32.gmra.mrb[0].mxu0 %v2165
        %v2368 = vpop.f32.mrb[0].mxu0
        %v2369 = vadd.f32 0.0, %v2368
        %v2370 = vpop.f32.mrb[0].mxu0
        %2371 = vmatprep.mubr.f32.mxu0 0.0
        %2372 = vmatmul.mubr.f32.gmra.mrb[0].mxu0 %v2168
        %v2373 = vpop.f32.mrb[0].mxu0
        %v2374 = vadd.f32 0.0, %v2373
        %v2375 = vpop.f32.mrb[0].mxu0
        %2376 = vmatprep.mubr.f32.mxu0 0.0
        %2377 = vmatmul.mubr.f32.gmra.mrb[0].mxu0 %v2171
        %v2378 = vpop.f32.mrb[0].mxu0
        %v2379 = vadd.f32 0.0, %v2378
        %v2380 = vpop.f32.mrb[0].mxu0
        %2381 = vmatprep.mubr.f32.mxu0 0.0
        %2382 = vmatmul.mubr.f32.gmra.mrb[0].mxu0 %v2174
        %v2383 = vpop.f32.mrb[0].mxu0
        %v2384 = vadd.f32 0.0, %v2383
        %v2385 = vpop.f32.mrb[0].mxu0
        %2386 = vmatprep.mubr.f32.mxu0 0.0
        %2387 = vmatmul.mubr.f32.gmra.mrb[0].mxu0 %v2177
        %v2388 = vpop.f32.mrb[0].mxu0
        %v2389 = vadd.f32 0.0, %v2388
        %v2390 = vpop.f32.mrb[0].mxu0
        %2391 = vmatprep.mubr.f32.mxu0 0.0
        %2392 = vmatmul.mubr.f32.gmra.mrb[0].mxu0 %v2180
        %v2393 = vpop.f32.mrb[0].mxu0
        %v2394 = vadd.f32 0.0, %v2393
        %v2395 = vpop.f32.mrb[0].mxu0
        %2396 = vmatprep.mubr.f32.mxu0 0.0
        %2397 = vmatmul.mubr.f32.gmra.mrb[0].mxu0 %v2183
        %v2398 = vpop.f32.mrb[0].mxu0
        %v2399 = vadd.f32 0.0, %v2398
        %v2400 = vpop.f32.mrb[0].mxu0
        %2401 = vmatprep.mubr.f32.mxu0 0.0
        %2402 = vmatmul.mubr.f32.gmra.mrb[0].mxu0 %v2186
        %v2403 = vpop.f32.mrb[0].mxu0
        %v2404 = vadd.f32 0.0, %v2403
        %v2405 = vpop.f32.mrb[0].mxu0
        %2406 = vmatprep.mubr.f32.mxu0 0.0
        %2407 = vmatmul.mubr.f32.gmra.mrb[0].mxu0 %v2189
        %v2408 = vpop.f32.mrb[0].mxu0
        %v2409 = vadd.f32 0.0, %v2408
        %v2410 = vpop.f32.mrb[0].mxu0
        %2411 = vmatprep.mubr.f32.mxu0 0.0
        %2412 = vmatmul.mubr.f32.gmra.mrb[0].mxu0 %v2192
        %v2413 = vpop.f32.mrb[0].mxu0
        %v2414 = vadd.f32 0.0, %v2413
        %v2415 = vpop.f32.mrb[0].mxu0
        %2416 = vmatprep.mubr.f32.mxu0 0.0
        %2417 = vmatmul.mubr.f32.gmra.mrb[0].mxu0 %v2195
        %v2418 = vpop.f32.mrb[0].mxu0
        %v2419 = vadd.f32 0.0, %v2418
        %v2420 = vpop.f32.mrb[0].mxu0
        %2421 = vdwg.mxu0
        %v2422 = vadd.f32 %v1907, %v2264
        %v2423 = vadd.f32 %v1908, %v2269
        %v2424 = vadd.f32 %v1909, %v2274
        %v2425 = vadd.f32 %v1910, %v2279
        %v2426 = vadd.f32 %v1911, %v2284
        %v2427 = vadd.f32 %v1912, %v2289
        %v2428 = vadd.f32 %v1913, %v2294
        %v2429 = vadd.f32 %v1914, %v2299
        %v2430 = vadd.f32 %v1915, %v2304
        %v2431 = vadd.f32 %v1916, %v2309
        %v2432 = vadd.f32 %v1917, %v2314
        %v2433 = vadd.f32 %v1918, %v2319
        %v2434 = vadd.f32 %v1919, %v2324
        %v2435 = vadd.f32 %v1920, %v2329
        %v2436 = vadd.f32 %v1921, %v2334
        %v2437 = vadd.f32 %v1922, %v2339
        %v2438 = vadd.f32 %v1923, %v2344
        %v2439 = vadd.f32 %v1924, %v2349
        %v2440 = vadd.f32 %v1925, %v2354
        %v2441 = vadd.f32 %v1926, %v2359
        %v2442 = vadd.f32 %v1927, %v2364
        %v2443 = vadd.f32 %v1928, %v2369
        %v2444 = vadd.f32 %v1929, %v2374
        %v2445 = vadd.f32 %v1930, %v2379
        %v2446 = vadd.f32 %v1931, %v2384
        %v2447 = vadd.f32 %v1932, %v2389
        %v2448 = vadd.f32 %v1933, %v2394
        %v2449 = vadd.f32 %v1934, %v2399
        %v2450 = vadd.f32 %v1935, %v2404
        %v2451 = vadd.f32 %v1936, %v2409
        %v2452 = vadd.f32 %v1937, %v2414
        %v2453 = vadd.f32 %v1938, %v2419
        %v2454 = vld [vmem:[%s345] sm:$0xff]
        %v2455 = vld [vmem:[%s345 + $0x8] sm:$0xff]
        %v2456 = vld [vmem:[%s345 + $0x10] sm:$0xff]
        %v2457 = vld [vmem:[%s345 + $0x18] sm:$0xff]
        %v2458 = vld [vmem:[%s345 + $0x20] sm:$0xff]
        %v2459 = vld [vmem:[%s345 + $0x28] sm:$0xff]
        %v2460 = vld [vmem:[%s345 + $0x30] sm:$0xff]
        %v2461 = vld [vmem:[%s345 + $0x38] sm:$0xff]
        %v2462 = vld [vmem:[%s345 + $0x40] sm:$0xff]
        %v2463 = vld [vmem:[%s345 + $0x48] sm:$0xff]
        %v2464 = vld [vmem:[%s345 + $0x50] sm:$0xff]
        %v2465 = vld [vmem:[%s345 + $0x58] sm:$0xff]
        %v2466 = vld [vmem:[%s345 + $0x60] sm:$0xff]
        %v2467 = vld [vmem:[%s345 + $0x68] sm:$0xff]
        %v2468 = vld [vmem:[%s345 + $0x70] sm:$0xff]
        %v2469 = vld [vmem:[%s345 + $0x78] sm:$0xff]
        %v2470 = vld [vmem:[%s345 + $0x80] sm:$0xff]
        %v2471 = vld [vmem:[%s345 + $0x88] sm:$0xff]
        %v2472 = vld [vmem:[%s345 + $0x90] sm:$0xff]
        %v2473 = vld [vmem:[%s345 + $0x98] sm:$0xff]
        %v2474 = vld [vmem:[%s345 + $0xa0] sm:$0xff]
        %v2475 = vld [vmem:[%s345 + $0xa8] sm:$0xff]
        %v2476 = vld [vmem:[%s345 + $0xb0] sm:$0xff]
        %v2477 = vld [vmem:[%s345 + $0xb8] sm:$0xff]
        %v2478 = vld [vmem:[%s345 + $0xc0] sm:$0xff]
        %v2479 = vld [vmem:[%s345 + $0xc8] sm:$0xff]
        %v2480 = vld [vmem:[%s345 + $0xd0] sm:$0xff]
        %v2481 = vld [vmem:[%s345 + $0xd8] sm:$0xff]
        %v2482 = vld [vmem:[%s345 + $0xe0] sm:$0xff]
        %v2483 = vld [vmem:[%s345 + $0xe8] sm:$0xff]
        %v2484 = vld [vmem:[%s345 + $0xf0] sm:$0xff]
        %v2485 = vld [vmem:[%s345 + $0xf8] sm:$0xff]
        %v2486 = vld [vmem:[%s5] sm:$0xff]
        %v2487 = vld [vmem:[%s5 + $0x8] sm:$0xff]
        %v2488 = vld [vmem:[%s5 + $0x10] sm:$0xf]
        %vm2489 = vcmask 162816
        %v2491 = vsel %vm2489, %v2454, 0
        %v2494 = vsel %vm2489, %v2455, 0
        %v2497 = vsel %vm2489, %v2456, 0
        %v2500 = vsel %vm2489, %v2457, 0
        %v2503 = vsel %vm2489, %v2458, 0
        %v2506 = vsel %vm2489, %v2459, 0
        %v2509 = vsel %vm2489, %v2460, 0
        %v2512 = vsel %vm2489, %v2461, 0
        %v2515 = vsel %vm2489, %v2462, 0
        %v2518 = vsel %vm2489, %v2463, 0
        %v2521 = vsel %vm2489, %v2464, 0
        %v2524 = vsel %vm2489, %v2465, 0
        %v2527 = vsel %vm2489, %v2466, 0
        %v2530 = vsel %vm2489, %v2467, 0
        %v2533 = vsel %vm2489, %v2468, 0
        %v2536 = vsel %vm2489, %v2469, 0
        %v2539 = vsel %vm2489, %v2470, 0
        %v2542 = vsel %vm2489, %v2471, 0
        %v2545 = vsel %vm2489, %v2472, 0
        %v2548 = vsel %vm2489, %v2473, 0
        %v2551 = vsel %vm2489, %v2474, 0
        %v2554 = vsel %vm2489, %v2475, 0
        %v2557 = vsel %vm2489, %v2476, 0
        %v2560 = vsel %vm2489, %v2477, 0
        %v2563 = vsel %vm2489, %v2478, 0
        %v2566 = vsel %vm2489, %v2479, 0
        %v2569 = vsel %vm2489, %v2480, 0
        %v2572 = vsel %vm2489, %v2481, 0
        %v2575 = vsel %vm2489, %v2482, 0
        %v2578 = vsel %vm2489, %v2483, 0
        %v2581 = vsel %vm2489, %v2484, 0
        %v2584 = vsel %vm2489, %v2485, 0
        %vm2586 = vcmask 1043456
        %v2588 = vsel %vm2586, %v2488, 0
        %2590 = vmatprep.subr.mxu0 0.0
        %2591 = vmatpush1.msra.mxu0 %v2486
        %2592 = vmatprep.subr.mxu0 0.0
        %2593 = vmatpush1.msra.mxu0 %v2487
        %2594 = vmatprep.subr.mxu0 0.0
        %2595 = vmatpush1.msra.mxu0 %v2588
        %2596 = vmatprep.subr.mxu0 0.0
        %2597 = vmatpush1.msra.mxu0 0.0
        %2598 = vmatprep.subr.mxu0 0.0
        %2599 = vmatpush1.msra.mxu0 0.0
        %2600 = vmatprep.subr.mxu0 0.0
        %2601 = vmatpush1.msra.mxu0 0.0
        %2602 = vmatprep.subr.mxu0 0.0
        %2603 = vmatpush1.msra.mxu0 0.0
        %2604 = vmatprep.subr.mxu0 0.0
        %2605 = vmatpush1.msra.mxu0 0.0
        %2606 = vmatprep.subr.mxu0 0.0
        %2607 = vmatpush1.msra.mxu0 0.0
        %2608 = vmatprep.subr.mxu0 0.0
        %2609 = vmatpush1.msra.mxu0 0.0
        %2610 = vmatprep.subr.mxu0 0.0
        %2611 = vmatpush1.msra.mxu0 0.0
        %2612 = vmatprep.subr.mxu0 0.0
        %2613 = vmatpush1.msra.mxu0 0.0
        %2614 = vmatprep.subr.mxu0 0.0
        %2615 = vmatpush1.msra.mxu0 0.0
        %2616 = vmatprep.subr.mxu0 0.0
        %2617 = vmatpush1.msra.mxu0 0.0
        %2618 = vmatprep.subr.mxu0 0.0
        %2619 = vmatpush1.msra.mxu0 0.0
        %2620 = vmatprep.subr.mxu0 0.0
        %2621 = vmatpush1.msra.mxu0 0.0
        %2622 = vmatprep.subr.mxu0 0.0
        %2623 = vmatpush1.msra.mxu0 0.0
        %2624 = vmatprep.subr.mxu0 0.0
        %2625 = vmatpush1.msra.mxu0 0.0
        %2626 = vmatprep.subr.mxu0 0.0
        %2627 = vmatpush1.msra.mxu0 0.0
        %2628 = vmatprep.subr.mxu0 0.0
        %2629 = vmatpush1.msra.mxu0 0.0
        %2630 = vmatprep.subr.mxu0 0.0
        %2631 = vmatpush1.msra.mxu0 0.0
        %2632 = vmatprep.subr.mxu0 0.0
        %2633 = vmatpush1.msra.mxu0 0.0
        %2634 = vmatprep.subr.mxu0 0.0
        %2635 = vmatpush1.msra.mxu0 0.0
        %2636 = vmatprep.subr.mxu0 0.0
        %2637 = vmatpush1.msra.mxu0 0.0
        %2638 = vmatprep.subr.mxu0 0.0
        %2639 = vmatpush1.msra.mxu0 0.0
        %2640 = vmatprep.subr.mxu0 0.0
        %2641 = vmatpush1.msra.mxu0 0.0
        %2642 = vmatprep.subr.mxu0 0.0
        %2643 = vmatpush1.msra.mxu0 0.0
        %2644 = vmatprep.subr.mxu0 0.0
        %2645 = vmatpush1.msra.mxu0 0.0
        %2646 = vmatprep.subr.mxu0 0.0
        %2647 = vmatpush1.msra.mxu0 0.0
        %2648 = vmatprep.subr.mxu0 0.0
        %2649 = vmatpush1.msra.mxu0 0.0
        %2650 = vmatprep.subr.mxu0 0.0
        %2651 = vmatpush1.msra.mxu0 0.0
        %2652 = vmatprep.subr.mxu0 0.0
        %2653 = vmatpush1.msra.mxu0 0.0
        %2654 = vmatprep.mubr.f32.mxu0 0.0
        %2655 = vmatmul.mubr.f32.gmra.mrb[0].mxu0 %v2491
        %v2656 = vpop.f32.mrb[0].mxu0
        %v2657 = vadd.f32 0.0, %v2656
        %v2658 = vpop.f32.mrb[0].mxu0
        %2659 = vmatprep.mubr.f32.mxu0 0.0
        %2660 = vmatmul.mubr.f32.gmra.mrb[0].mxu0 %v2494
        %v2661 = vpop.f32.mrb[0].mxu0
        %v2662 = vadd.f32 0.0, %v2661
        %v2663 = vpop.f32.mrb[0].mxu0
        %2664 = vmatprep.mubr.f32.mxu0 0.0
        %2665 = vmatmul.mubr.f32.gmra.mrb[0].mxu0 %v2497
        %v2666 = vpop.f32.mrb[0].mxu0
        %v2667 = vadd.f32 0.0, %v2666
        %v2668 = vpop.f32.mrb[0].mxu0
        %2669 = vmatprep.mubr.f32.mxu0 0.0
        %2670 = vmatmul.mubr.f32.gmra.mrb[0].mxu0 %v2500
        %v2671 = vpop.f32.mrb[0].mxu0
        %v2672 = vadd.f32 0.0, %v2671
        %v2673 = vpop.f32.mrb[0].mxu0
        %2674 = vmatprep.mubr.f32.mxu0 0.0
        %2675 = vmatmul.mubr.f32.gmra.mrb[0].mxu0 %v2503
        %v2676 = vpop.f32.mrb[0].mxu0
        %v2677 = vadd.f32 0.0, %v2676
        %v2678 = vpop.f32.mrb[0].mxu0
        %2679 = vmatprep.mubr.f32.mxu0 0.0
        %2680 = vmatmul.mubr.f32.gmra.mrb[0].mxu0 %v2506
        %v2681 = vpop.f32.mrb[0].mxu0
        %v2682 = vadd.f32 0.0, %v2681
        %v2683 = vpop.f32.mrb[0].mxu0
        %2684 = vmatprep.mubr.f32.mxu0 0.0
        %2685 = vmatmul.mubr.f32.gmra.mrb[0].mxu0 %v2509
        %v2686 = vpop.f32.mrb[0].mxu0
        %v2687 = vadd.f32 0.0, %v2686
        %v2688 = vpop.f32.mrb[0].mxu0
        %2689 = vmatprep.mubr.f32.mxu0 0.0
        %2690 = vmatmul.mubr.f32.gmra.mrb[0].mxu0 %v2512
        %v2691 = vpop.f32.mrb[0].mxu0
        %v2692 = vadd.f32 0.0, %v2691
        %v2693 = vpop.f32.mrb[0].mxu0
        %2694 = vmatprep.mubr.f32.mxu0 0.0
        %2695 = vmatmul.mubr.f32.gmra.mrb[0].mxu0 %v2515
        %v2696 = vpop.f32.mrb[0].mxu0
        %v2697 = vadd.f32 0.0, %v2696
        %v2698 = vpop.f32.mrb[0].mxu0
        %2699 = vmatprep.mubr.f32.mxu0 0.0
        %2700 = vmatmul.mubr.f32.gmra.mrb[0].mxu0 %v2518
        %v2701 = vpop.f32.mrb[0].mxu0
        %v2702 = vadd.f32 0.0, %v2701
        %v2703 = vpop.f32.mrb[0].mxu0
        %2704 = vmatprep.mubr.f32.mxu0 0.0
        %2705 = vmatmul.mubr.f32.gmra.mrb[0].mxu0 %v2521
        %v2706 = vpop.f32.mrb[0].mxu0
        %v2707 = vadd.f32 0.0, %v2706
        %v2708 = vpop.f32.mrb[0].mxu0
        %2709 = vmatprep.mubr.f32.mxu0 0.0
        %2710 = vmatmul.mubr.f32.gmra.mrb[0].mxu0 %v2524
        %v2711 = vpop.f32.mrb[0].mxu0
        %v2712 = vadd.f32 0.0, %v2711
        %v2713 = vpop.f32.mrb[0].mxu0
        %2714 = vmatprep.mubr.f32.mxu0 0.0
        %2715 = vmatmul.mubr.f32.gmra.mrb[0].mxu0 %v2527
        %v2716 = vpop.f32.mrb[0].mxu0
        %v2717 = vadd.f32 0.0, %v2716
        %v2718 = vpop.f32.mrb[0].mxu0
        %2719 = vmatprep.mubr.f32.mxu0 0.0
        %2720 = vmatmul.mubr.f32.gmra.mrb[0].mxu0 %v2530
        %v2721 = vpop.f32.mrb[0].mxu0
        %v2722 = vadd.f32 0.0, %v2721
        %v2723 = vpop.f32.mrb[0].mxu0
        %2724 = vmatprep.mubr.f32.mxu0 0.0
        %2725 = vmatmul.mubr.f32.gmra.mrb[0].mxu0 %v2533
        %v2726 = vpop.f32.mrb[0].mxu0
        %v2727 = vadd.f32 0.0, %v2726
        %v2728 = vpop.f32.mrb[0].mxu0
        %2729 = vmatprep.mubr.f32.mxu0 0.0
        %2730 = vmatmul.mubr.f32.gmra.mrb[0].mxu0 %v2536
        %v2731 = vpop.f32.mrb[0].mxu0
        %v2732 = vadd.f32 0.0, %v2731
        %v2733 = vpop.f32.mrb[0].mxu0
        %2734 = vmatprep.mubr.f32.mxu0 0.0
        %2735 = vmatmul.mubr.f32.gmra.mrb[0].mxu0 %v2539
        %v2736 = vpop.f32.mrb[0].mxu0
        %v2737 = vadd.f32 0.0, %v2736
        %v2738 = vpop.f32.mrb[0].mxu0
        %2739 = vmatprep.mubr.f32.mxu0 0.0
        %2740 = vmatmul.mubr.f32.gmra.mrb[0].mxu0 %v2542
        %v2741 = vpop.f32.mrb[0].mxu0
        %v2742 = vadd.f32 0.0, %v2741
        %v2743 = vpop.f32.mrb[0].mxu0
        %2744 = vmatprep.mubr.f32.mxu0 0.0
        %2745 = vmatmul.mubr.f32.gmra.mrb[0].mxu0 %v2545
        %v2746 = vpop.f32.mrb[0].mxu0
        %v2747 = vadd.f32 0.0, %v2746
        %v2748 = vpop.f32.mrb[0].mxu0
        %2749 = vmatprep.mubr.f32.mxu0 0.0
        %2750 = vmatmul.mubr.f32.gmra.mrb[0].mxu0 %v2548
        %v2751 = vpop.f32.mrb[0].mxu0
        %v2752 = vadd.f32 0.0, %v2751
        %v2753 = vpop.f32.mrb[0].mxu0
        %2754 = vmatprep.mubr.f32.mxu0 0.0
        %2755 = vmatmul.mubr.f32.gmra.mrb[0].mxu0 %v2551
        %v2756 = vpop.f32.mrb[0].mxu0
        %v2757 = vadd.f32 0.0, %v2756
        %v2758 = vpop.f32.mrb[0].mxu0
        %2759 = vmatprep.mubr.f32.mxu0 0.0
        %2760 = vmatmul.mubr.f32.gmra.mrb[0].mxu0 %v2554
        %v2761 = vpop.f32.mrb[0].mxu0
        %v2762 = vadd.f32 0.0, %v2761
        %v2763 = vpop.f32.mrb[0].mxu0
        %2764 = vmatprep.mubr.f32.mxu0 0.0
        %2765 = vmatmul.mubr.f32.gmra.mrb[0].mxu0 %v2557
        %v2766 = vpop.f32.mrb[0].mxu0
        %v2767 = vadd.f32 0.0, %v2766
        %v2768 = vpop.f32.mrb[0].mxu0
        %2769 = vmatprep.mubr.f32.mxu0 0.0
        %2770 = vmatmul.mubr.f32.gmra.mrb[0].mxu0 %v2560
        %v2771 = vpop.f32.mrb[0].mxu0
        %v2772 = vadd.f32 0.0, %v2771
        %v2773 = vpop.f32.mrb[0].mxu0
        %2774 = vmatprep.mubr.f32.mxu0 0.0
        %2775 = vmatmul.mubr.f32.gmra.mrb[0].mxu0 %v2563
        %v2776 = vpop.f32.mrb[0].mxu0
        %v2777 = vadd.f32 0.0, %v2776
        %v2778 = vpop.f32.mrb[0].mxu0
        %2779 = vmatprep.mubr.f32.mxu0 0.0
        %2780 = vmatmul.mubr.f32.gmra.mrb[0].mxu0 %v2566
        %v2781 = vpop.f32.mrb[0].mxu0
        %v2782 = vadd.f32 0.0, %v2781
        %v2783 = vpop.f32.mrb[0].mxu0
        %2784 = vmatprep.mubr.f32.mxu0 0.0
        %2785 = vmatmul.mubr.f32.gmra.mrb[0].mxu0 %v2569
        %v2786 = vpop.f32.mrb[0].mxu0
        %v2787 = vadd.f32 0.0, %v2786
        %v2788 = vpop.f32.mrb[0].mxu0
        %2789 = vmatprep.mubr.f32.mxu0 0.0
        %2790 = vmatmul.mubr.f32.gmra.mrb[0].mxu0 %v2572
        %v2791 = vpop.f32.mrb[0].mxu0
        %v2792 = vadd.f32 0.0, %v2791
        %v2793 = vpop.f32.mrb[0].mxu0
        %2794 = vmatprep.mubr.f32.mxu0 0.0
        %2795 = vmatmul.mubr.f32.gmra.mrb[0].mxu0 %v2575
        %v2796 = vpop.f32.mrb[0].mxu0
        %v2797 = vadd.f32 0.0, %v2796
        %v2798 = vpop.f32.mrb[0].mxu0
        %2799 = vmatprep.mubr.f32.mxu0 0.0
        %2800 = vmatmul.mubr.f32.gmra.mrb[0].mxu0 %v2578
        %v2801 = vpop.f32.mrb[0].mxu0
        %v2802 = vadd.f32 0.0, %v2801
        %v2803 = vpop.f32.mrb[0].mxu0
        %2804 = vmatprep.mubr.f32.mxu0 0.0
        %2805 = vmatmul.mubr.f32.gmra.mrb[0].mxu0 %v2581
        %v2806 = vpop.f32.mrb[0].mxu0
        %v2807 = vadd.f32 0.0, %v2806
        %v2808 = vpop.f32.mrb[0].mxu0
        %2809 = vmatprep.mubr.f32.mxu0 0.0
        %2810 = vmatmul.mubr.f32.gmra.mrb[0].mxu0 %v2584
        %v2811 = vpop.f32.mrb[0].mxu0
        %v2812 = vadd.f32 0.0, %v2811
        %v2813 = vpop.f32.mrb[0].mxu0
        %2814 = vdwg.mxu0
        %v2815 = vmul.f32 %v2422, %v2657
        %v2816 = vmul.f32 %v2423, %v2662
        %v2817 = vmul.f32 %v2424, %v2667
        %v2818 = vmul.f32 %v2425, %v2672
        %v2819 = vmul.f32 %v2426, %v2677
        %v2820 = vmul.f32 %v2427, %v2682
        %v2821 = vmul.f32 %v2428, %v2687
        %v2822 = vmul.f32 %v2429, %v2692
        %v2823 = vmul.f32 %v2430, %v2697
        %v2824 = vmul.f32 %v2431, %v2702
        %v2825 = vmul.f32 %v2432, %v2707
        %v2826 = vmul.f32 %v2433, %v2712
        %v2827 = vmul.f32 %v2434, %v2717
        %v2828 = vmul.f32 %v2435, %v2722
        %v2829 = vmul.f32 %v2436, %v2727
        %v2830 = vmul.f32 %v2437, %v2732
        %v2831 = vmul.f32 %v2438, %v2737
        %v2832 = vmul.f32 %v2439, %v2742
        %v2833 = vmul.f32 %v2440, %v2747
        %v2834 = vmul.f32 %v2441, %v2752
        %v2835 = vmul.f32 %v2442, %v2757
        %v2836 = vmul.f32 %v2443, %v2762
        %v2837 = vmul.f32 %v2444, %v2767
        %v2838 = vmul.f32 %v2445, %v2772
        %v2839 = vmul.f32 %v2446, %v2777
        %v2840 = vmul.f32 %v2447, %v2782
        %v2841 = vmul.f32 %v2448, %v2787
        %v2842 = vmul.f32 %v2449, %v2792
        %v2843 = vmul.f32 %v2450, %v2797
        %v2844 = vmul.f32 %v2451, %v2802
        %v2845 = vmul.f32 %v2452, %v2807
        %v2846 = vmul.f32 %v2453, %v2812
        %v2847 = vld [vmem:[%s352] sm:$0x3]
        %v2848 = vlaneseq
        %v2849 = vshrl.u32 %v2848, 7
        %v2850 = vadd.s32 %v2849, 8
        %v2851 = vlaneseq
        %v2852 = vshrl.u32 %v2851, 7
        %v2853 = vsub.s32 0, %v2852
        %v2854 = vrot.slane %v2847, %v2853
        %v2855 = vlaneseq
        %v2856 = vshrl.u32 %v2855, 7
        %v2857 = vsub.s32 1, %v2856
        %v2858 = vrot.slane %v2847, %v2857
        %vm2859 = vcmp.eq.s32.totalorder %v2849, %v2854
        %vm2860 = vcmp.eq.s32.totalorder %v2849, %v2858
        %vm2861 = vcmp.eq.s32.totalorder %v2850, %v2854
        %vm2862 = vcmp.eq.s32.totalorder %v2850, %v2858
        %v2863 = vsel %vm2859, 1, 0
        %v2864 = vsel %vm2860, 1, 0
        %v2865 = vsel %vm2861, 1, 0
        %v2866 = vsel %vm2862, 1, 0
        %v2867 = vcvt.s32.f32 %v2863
        %v2868 = vcvt.s32.f32 %v2864
        %v2869 = vcvt.s32.f32 %v2865
        %v2870 = vcvt.s32.f32 %v2866
        %v2871 = vld [vmem:[%s323] sm:$0xff]
        %v2872 = vld [vmem:[%s323 + $0x8] sm:$0xff]
        %2873 = vmatprep.subr.mxu0 0.0
        %2874 = vmatpush1.msra.mxu0 %v2815
        %2875 = vmatprep.subr.mxu0 0.0
        %2876 = vmatpush1.msra.mxu0 %v2816
        %2877 = vmatprep.subr.mxu0 0.0
        %2878 = vmatpush1.msra.mxu0 %v2817
        %2879 = vmatprep.subr.mxu0 0.0
        %2880 = vmatpush1.msra.mxu0 %v2818
        %2881 = vmatprep.subr.mxu0 0.0
        %2882 = vmatpush1.msra.mxu0 %v2819
        %2883 = vmatprep.subr.mxu0 0.0
        %2884 = vmatpush1.msra.mxu0 %v2820
        %2885 = vmatprep.subr.mxu0 0.0
        %2886 = vmatpush1.msra.mxu0 %v2821
        %2887 = vmatprep.subr.mxu0 0.0
        %2888 = vmatpush1.msra.mxu0 %v2822
        %2889 = vmatprep.subr.mxu0 0.0
        %2890 = vmatpush1.msra.mxu0 %v2823
        %2891 = vmatprep.subr.mxu0 0.0
        %2892 = vmatpush1.msra.mxu0 %v2824
        %2893 = vmatprep.subr.mxu0 0.0
        %2894 = vmatpush1.msra.mxu0 %v2825
        %2895 = vmatprep.subr.mxu0 0.0
        %2896 = vmatpush1.msra.mxu0 %v2826
        %2897 = vmatprep.subr.mxu0 0.0
        %2898 = vmatpush1.msra.mxu0 %v2827
        %2899 = vmatprep.subr.mxu0 0.0
        %2900 = vmatpush1.msra.mxu0 %v2828
        %2901 = vmatprep.subr.mxu0 0.0
        %2902 = vmatpush1.msra.mxu0 %v2829
        %2903 = vmatprep.subr.mxu0 0.0
        %2904 = vmatpush1.msra.mxu0 %v2830
        %2905 = vmatprep.subr.mxu0 0.0
        %2906 = vmatpush1.msra.mxu0 %v2831
        %2907 = vmatprep.subr.mxu0 0.0
        %2908 = vmatpush1.msra.mxu0 %v2832
        %2909 = vmatprep.subr.mxu0 0.0
        %2910 = vmatpush1.msra.mxu0 %v2833
        %2911 = vmatprep.subr.mxu0 0.0
        %2912 = vmatpush1.msra.mxu0 %v2834
        %2913 = vmatprep.subr.mxu0 0.0
        %2914 = vmatpush1.msra.mxu0 %v2835
        %2915 = vmatprep.subr.mxu0 0.0
        %2916 = vmatpush1.msra.mxu0 %v2836
        %2917 = vmatprep.subr.mxu0 0.0
        %2918 = vmatpush1.msra.mxu0 %v2837
        %2919 = vmatprep.subr.mxu0 0.0
        %2920 = vmatpush1.msra.mxu0 %v2838
        %2921 = vmatprep.subr.mxu0 0.0
        %2922 = vmatpush1.msra.mxu0 %v2839
        %2923 = vmatprep.subr.mxu0 0.0
        %2924 = vmatpush1.msra.mxu0 %v2840
        %2925 = vmatprep.subr.mxu0 0.0
        %2926 = vmatpush1.msra.mxu0 %v2841
        %2927 = vmatprep.subr.mxu0 0.0
        %2928 = vmatpush1.msra.mxu0 %v2842
        %2929 = vmatprep.subr.mxu0 0.0
        %2930 = vmatpush1.msra.mxu0 %v2843
        %2931 = vmatprep.subr.mxu0 0.0
        %2932 = vmatpush1.msra.mxu0 %v2844
        %2933 = vmatprep.subr.mxu0 0.0
        %2934 = vmatpush1.msra.mxu0 %v2845
        %2935 = vmatprep.subr.mxu0 0.0
        %2936 = vmatpush1.msra.mxu0 %v2846
        %2937 = vmatprep.mubr.f32.mxu0 %v2868
        %2938 = vmatmul.mubr.f32.gmra.mrb[0].mxu0 %v2867
        %v2939 = vpop.f32.mrb[0].mxu0
        %v2940 = vadd.f32 0.0, %v2939
        %v2941 = vpop.f32.mrb[0].mxu0
        %2942 = vmatprep.mubr.f32.mxu0 %v2870
        %2943 = vmatmul.mubr.f32.gmra.mrb[0].mxu0 %v2869
        %v2944 = vpop.f32.mrb[0].mxu0
        %v2945 = vadd.f32 0.0, %v2944
        %v2946 = vpop.f32.mrb[0].mxu0
        %2947 = vdwg.mxu0
        %v2948 = vadd.f32 %v2871, %v2940
        %v2949 = vadd.f32 %v2872, %v2945
        %2950 = vst [vmem:[%s323] sm:$0xff] %v2948
        %2951 = vst [vmem:[%s323 + $0x8] sm:$0xff] %v2949
        %s2952 = sand.u32 %s194, 1
        %s2953 = scalar_lea.sflag [#allocation3], %s2952
        %s2954 = sand.u32 %s194, 1
        %s2955 = smul.addr %s2954, 16
        %s2956 = scalar_lea.vmem [#allocation2], %s2955
        // Predicated region
        $region49: #{tpu_custom_call.1} parent=43 // pred_check
          %p2957 = pneg %p204
        $region50: #{tpu_custom_call.1} parent=43 // pred_check_branch
          %2959 = sbr.rel (%p2957) target = $region52
        $region51: #{tpu_custom_call.1} parent=43 // pred_region
          %s2961 = ssub.s32 256, 256
          %2962 = vsyncadd %s2953, %s2961
          %s2963 = smul.addr %s24, 2
          %s2964 = smul.addr %s2963, 128
          %s2965 = scalar_lea.hbm %s6, %s2964
          %s2966 = sshll.u32 %s2956, 4
          %s2967 = int_to_ptr.vmem [resolvable:$true] %s2966
          %2972 = dma.vmem_to_hbm [thread:$0]  %s2967, 256, %s2965, %s2953, 128, 128, 8
        $region52: #{tpu_custom_call.1} parent=43 // pred_fallthru
          _
      $region44: #{tpu_custom_call.1} parent=5 // pred_fallthru
        _
      %p2973 = scmp.le.s32.totalorder 2, %s15
      // Predicated region
      $region53: #{tpu_custom_call.1} parent=5 // pred_check
        %p2974 = pneg %p2973
      $region54: #{tpu_custom_call.1} parent=5 // pred_check_branch
        %2976 = sbr.rel (%p2974) target = $region56
      $region55: #{tpu_custom_call.1} parent=5 // pred_region
        %s2977 = ssub.s32 %s15, 2
        // Predicated region
        $region57: #{tpu_custom_call.1} parent=55 // pred_check
          %p2978 = pneg %p210
        $region58: #{tpu_custom_call.1} parent=55 // pred_check_branch
          %2980 = sbr.rel (%p2978) target = $region60
        $region59: #{tpu_custom_call.1} parent=55 // pred_region
          %s2981 = sand.u32 %s195, 1
          %s2982 = scalar_lea.sflag [#allocation3], %s2981
          %s2983 = sand.u32 %s195, 1
          %s2984 = smul.addr %s2983, 16
          %s2985 = scalar_lea.vmem [#allocation2], %s2984
          %2986 = dma.done %s2982, 256
        $region60: #{tpu_custom_call.1} parent=55 // pred_fallthru
          _
      $region56: #{tpu_custom_call.1} parent=5 // pred_fallthru
        _
    $region6: #{tpu_custom_call.1} parent=1 // loop_footer
      %s19 = sadd.s32 1, %s15
    $region7: #{tpu_custom_call.1} parent=1 // loop_footer_branch
      %14 = sbr.rel target = $region3
    $region8: #{tpu_custom_call.1} parent=1 // loop_exit
      _
    %2987 = vsyncpa [#allocation3], 1
    %s2988 = scalar_lea.sflag [#allocation3], 1
    %2989 = vsyncpa %s2988, 1

</llo_original>
